<compile_context>
chip_gen: v5e
topology: v5e:2x2
jax: 0.10.0
libtpu: 0.0.40
codegen_flags: <defaults>
</compile_context>

<pallas_src>
import functools

import jax
import jax.numpy as jnp
from jax.experimental import pallas as pl
from jax.experimental.pallas import tpu as pltpu

VOCAB_SIZE = 15000
EMBED_DIM = 64
NUM_CLASS = 2
KSIZE = 15
STRIDE = 7

C1 = 32          # conv block 1 out channels
C2 = 64          # conv block 2 out channels
HIDDEN = 128     # linear-1 width
HEAD_PAD = 128   # padded class-logit lane width (>= NUM_CLASS, lane dense)


# ------------------------------ fused kernel --------------------------------

def _gcnn_kernel(x_ref, w1_ref, b1_ref, w2_ref, b2_ref,
                 wl1_ref, bl1_ref, wl2_ref, bl2_ref,
                 out_ref, x32_ref, h1_ref, *, l1, l2):
    """One batch element per grid step; everything stays in VMEM."""
    # Stage the bf16 sequence tile as f32 once so the stride-7 tap reads below
    # operate on 32-bit data (the well-supported strided-load path).
    x32_ref[...] = x_ref[...].astype(jnp.float32)

    # ---- gated conv block 1: Conv1d(64->32, k=15, s=7) x2, fused as one
    # (A|B)-concatenated matmul per tap, accumulated in registers. ----
    acc1 = jnp.zeros((l1, 2 * C1), jnp.float32)
    for k in range(KSIZE):
        xk = x32_ref[pl.ds(k, l1, stride=STRIDE), :].astype(jnp.bfloat16)
        wk = w1_ref[k * EMBED_DIM:(k + 1) * EMBED_DIM, :]          # (64, 64) bf16
        acc1 = acc1 + jnp.dot(xk, wk, preferred_element_type=jnp.float32)
    z1 = acc1 + b1_ref[...]
    h1_ref[...] = z1[:, :C1] * jax.nn.sigmoid(z1[:, C1:])           # GLU, f32

    # ---- gated conv block 2: Conv1d(32->64, k=15, s=7) x2 + GLU ----
    acc2 = jnp.zeros((l2, 2 * C2), jnp.float32)
    for k in range(KSIZE):
        hk = h1_ref[pl.ds(k, l2, stride=STRIDE), :].astype(jnp.bfloat16)
        wk = w2_ref[k * C1:(k + 1) * C1, :]                         # (32, 128) bf16
        acc2 = acc2 + jnp.dot(hk, wk, preferred_element_type=jnp.float32)
    z2 = acc2 + b2_ref[...]
    h2 = z2[:, :C2] * jax.nn.sigmoid(z2[:, C2:])                    # (l2, 64) f32

    # ---- mean pool over length + Linear(64->128) + Linear(128->2 padded) ----
    pooled = jnp.mean(h2, axis=0, keepdims=True)                    # (1, 64)
    z = jnp.dot(pooled.astype(jnp.bfloat16), wl1_ref[...],
                preferred_element_type=jnp.float32) + bl1_ref[...]  # (1, 128)
    logits = jnp.dot(z.astype(jnp.bfloat16), wl2_ref[...],
                     preferred_element_type=jnp.float32) + bl2_ref[...]
    out_ref[...] = logits                                           # (1, 128)


def gcnn_pallas(emb_bf16, w1c, b1c, w2c, b2c, wl1, bl1, wl2p, bl2p):
    batch, length, _ = emb_bf16.shape
    l1 = (length - KSIZE) // STRIDE + 1
    l2 = (l1 - KSIZE) // STRIDE + 1
    assert l2 >= 1, "sequence too short for two stride-7 k=15 convs (need >= 113)"

    kernel = functools.partial(_gcnn_kernel, l1=l1, l2=l2)
    const = lambda b: (0, 0)   # weights: same block every grid step (stay resident)

    out = pl.pallas_call(
        kernel,
        out_shape=jax.ShapeDtypeStruct((batch, 1, HEAD_PAD), jnp.float32),
        grid=(batch,),
        in_specs=[
            pl.BlockSpec((None, length, EMBED_DIM), lambda b: (b, 0, 0)),  # emb
            pl.BlockSpec((KSIZE * EMBED_DIM, 2 * C1), const),              # W1 (A|B)
            pl.BlockSpec((1, 2 * C1), const),                              # b1 (A|B)
            pl.BlockSpec((KSIZE * C1, 2 * C2), const),                     # W2 (A|B)
            pl.BlockSpec((1, 2 * C2), const),                              # b2 (A|B)
            pl.BlockSpec((C2, HIDDEN), const),                             # W_l1
            pl.BlockSpec((1, HIDDEN), const),                              # b_l1
            pl.BlockSpec((HIDDEN, HEAD_PAD), const),                       # W_l2 pad
            pl.BlockSpec((1, HEAD_PAD), const),                            # b_l2 pad
        ],
        out_specs=pl.BlockSpec((None, 1, HEAD_PAD), lambda b: (b, 0, 0)),
        scratch_shapes=[
            pltpu.VMEM((length, EMBED_DIM), jnp.float32),  # f32 staged sequence
            pltpu.VMEM((l1, C1), jnp.float32),             # h1 (stays in VMEM)
        ],
        compiler_params=pltpu.CompilerParams(
            dimension_semantics=("parallel",),           # shard batch across TCs
            vmem_limit_bytes=32 * 1024 * 1024,           # tiny footprint; safe on v5e/v6e/v7x
        ),
    )(emb_bf16, w1c, b1c, w2c, b2c, wl1, bl1, wl2p, bl2p)
    return out[:, 0, :NUM_CLASS]


# --------------------------------- glue -------------------------------------

def init_params(key):
    ks = jax.random.split(key, 13)

    def conv_w(k, c_in, c_out):
        bound = 1.0 / float(jnp.sqrt(c_in * KSIZE))
        return jax.random.uniform(k, (KSIZE * c_in, c_out), jnp.float32, -bound, bound)

    def conv_b(k, c_in, c_out):
        bound = 1.0 / float(jnp.sqrt(c_in * KSIZE))
        return jax.random.uniform(k, (1, c_out), jnp.float32, -bound, bound)

    def lin_w(k, f_in, f_out):
        bound = 1.0 / float(jnp.sqrt(f_in))
        return jax.random.uniform(k, (f_in, f_out), jnp.float32, -bound, bound)

    def lin_b(k, f_in, f_out):
        bound = 1.0 / float(jnp.sqrt(f_in))
        return jax.random.uniform(k, (1, f_out), jnp.float32, -bound, bound)

    xav = float(jnp.sqrt(6.0 / (VOCAB_SIZE + EMBED_DIM)))
    return {
        "embedding": jax.random.uniform(ks[0], (VOCAB_SIZE, EMBED_DIM),
                                        jnp.float32, -xav, xav),
        "wa1": conv_w(ks[1], EMBED_DIM, C1), "ba1": conv_b(ks[2], EMBED_DIM, C1),
        "wb1": conv_w(ks[3], EMBED_DIM, C1), "bb1": conv_b(ks[4], EMBED_DIM, C1),
        "wa2": conv_w(ks[5], C1, C2),        "ba2": conv_b(ks[6], C1, C2),
        "wb2": conv_w(ks[7], C1, C2),        "bb2": conv_b(ks[8], C1, C2),
        "w_l1": lin_w(ks[9], C2, HIDDEN),    "b_l1": lin_b(ks[10], C2, HIDDEN),
        "w_l2": lin_w(ks[11], HIDDEN, NUM_CLASS),
        "b_l2": lin_b(ks[12], HIDDEN, NUM_CLASS),
    }


@jax.jit
def gcnn_forward(params, word_index):
    # Embedding lookup (glue): PyTorch embedding_table(word_index).
    emb = jnp.take(params["embedding"], word_index, axis=0).astype(jnp.bfloat16)

    # Concatenate the A/B GLU weights along the output dim (one matmul per block);
    # pad the 2-class head to a lane-dense 128-wide slab (zeros, sliced in glue).
    w1c = jnp.concatenate([params["wa1"], params["wb1"]], axis=1).astype(jnp.bfloat16)
    b1c = jnp.concatenate([params["ba1"], params["bb1"]], axis=1)
    w2c = jnp.concatenate([params["wa2"], params["wb2"]], axis=1).astype(jnp.bfloat16)
    b2c = jnp.concatenate([params["ba2"], params["bb2"]], axis=1)
    wl1 = params["w_l1"].astype(jnp.bfloat16)
    bl1 = params["b_l1"]
    wl2p = jnp.zeros((HIDDEN, HEAD_PAD), jnp.float32
                     ).at[:, :NUM_CLASS].set(params["w_l2"]).astype(jnp.bfloat16)
    bl2p = jnp.zeros((1, HEAD_PAD), jnp.float32).at[:, :NUM_CLASS].set(params["b_l2"])

    return gcnn_pallas(emb, w1c, b1c, w2c, b2c, wl1, bl1, wl2p, bl2p)


# Pure-JAX f32 reference (matches the PyTorch module) for a sanity check.
def _im2col(x, k, s):
    b, length, c = x.shape
    l_out = (length - k) // s + 1
    idx = jnp.arange(l_out)[:, None] * s + jnp.arange(k)[None, :]
    return x[:, idx, :].reshape(b, l_out, k * c)


def reference_forward(params, word_index):
    emb = jnp.take(params["embedding"], word_index, axis=0)
    p1 = _im2col(emb, KSIZE, STRIDE)
    h1 = (p1 @ params["wa1"] + params["ba1"]) * \
         jax.nn.sigmoid(p1 @ params["wb1"] + params["bb1"])
    p2 = _im2col(h1, KSIZE, STRIDE)
    h2 = (p2 @ params["wa2"] + params["ba2"]) * \
         jax.nn.sigmoid(p2 @ params["wb2"] + params["bb2"])
    pooled = jnp.mean(h2, axis=1)
    z = pooled @ params["w_l1"] + params["b_l1"]
    return z @ params["w_l2"] + params["b_l2"]


if __name__ == "__main__":
    key = jax.random.PRNGKey(0)
    pkey, dkey = jax.random.split(key)
    params = init_params(pkey)

    # seq length must be >= 113 so both stride-7 convs produce output; use 256.
    B, L = 2, 256
    word_index = jax.random.randint(dkey, (B, L), 0, VOCAB_SIZE, dtype=jnp.int32)

    logits = gcnn_forward(params, word_index)
    jax.block_until_ready(logits)
    assert logits.shape == (B, NUM_CLASS) and logits.dtype == jnp.float32

    ref = reference_forward(params, word_index)
    assert bool(jnp.all(jnp.abs(logits - ref) < 2e-2)), "kernel/ref mismatch"
    print("KERNEL_OK")
</pallas_src>

<mosaic_0001>
module attributes {stable_mosaic.version = 11 : i64} {
  func.func @_gcnn_kernel(%arg0: i32, %arg1: memref<1x256x64xbf16, #tpu.memory_space<vmem>>, %arg2: memref<960x64xbf16, #tpu.memory_space<vmem>>, %arg3: memref<1x64xf32, #tpu.memory_space<vmem>>, %arg4: memref<480x128xbf16, #tpu.memory_space<vmem>>, %arg5: memref<1x128xf32, #tpu.memory_space<vmem>>, %arg6: memref<64x128xbf16, #tpu.memory_space<vmem>>, %arg7: memref<1x128xf32, #tpu.memory_space<vmem>>, %arg8: memref<128x128xbf16, #tpu.memory_space<vmem>>, %arg9: memref<1x128xf32, #tpu.memory_space<vmem>>, %arg10: memref<1x1x128xf32, #tpu.memory_space<vmem>>, %arg11: memref<256x64xf32, #tpu.memory_space<vmem>>, %arg12: memref<35x32xf32, #tpu.memory_space<vmem>>) attributes {dimension_semantics = [#tpu.dimension_semantics<parallel>], iteration_bounds = array<i64: 2>, scalar_prefetch = 0 : i64, scratch_operands = 2 : i64, tpu.core_type = #tpu.core_type<tc>, window_params = [{transform_indices = @transform_0, window_bounds = array<i64: 1, 256, 64>}, {pipeline_mode = #tpu.pipeline_mode<synchronous>, transform_indices = @transform_1, window_bounds = array<i64: 960, 64>}, {pipeline_mode = #tpu.pipeline_mode<synchronous>, transform_indices = @transform_2, window_bounds = array<i64: 1, 64>}, {pipeline_mode = #tpu.pipeline_mode<synchronous>, transform_indices = @transform_3, window_bounds = array<i64: 480, 128>}, {pipeline_mode = #tpu.pipeline_mode<synchronous>, transform_indices = @transform_4, window_bounds = array<i64: 1, 128>}, {pipeline_mode = #tpu.pipeline_mode<synchronous>, transform_indices = @transform_5, window_bounds = array<i64: 64, 128>}, {pipeline_mode = #tpu.pipeline_mode<synchronous>, transform_indices = @transform_6, window_bounds = array<i64: 1, 128>}, {pipeline_mode = #tpu.pipeline_mode<synchronous>, transform_indices = @transform_7, window_bounds = array<i64: 128, 128>}, {pipeline_mode = #tpu.pipeline_mode<synchronous>, transform_indices = @transform_8, window_bounds = array<i64: 1, 128>}, {transform_indices = @transform_9, window_bounds = array<i64: 1, 1, 128>}]} {
    %c0 = arith.constant 0 : index
    %c0_0 = arith.constant 0 : index
    %c0_1 = arith.constant 0 : index
    %0 = vector.load %arg1[%c0, %c0_0, %c0_1] : memref<1x256x64xbf16, #tpu.memory_space<vmem>>, vector<1x256x64xbf16>
    %1 = vector.shape_cast %0 : vector<1x256x64xbf16> to vector<256x64xbf16>
    %2 = arith.extf %1 : vector<256x64xbf16> to vector<256x64xf32>
    %c0_2 = arith.constant 0 : index
    %c0_3 = arith.constant 0 : index
    %3 = vector.load %arg11[%c0_2, %c0_3] : memref<256x64xf32, #tpu.memory_space<vmem>>, vector<256x64xf32>
    tpu.vector_store %arg11[%c0_2, %c0_3], %2 {strides = array<i32>} : memref<256x64xf32, #tpu.memory_space<vmem>>, vector<256x64xf32>,
    %cst = arith.constant 0.000000e+00 : f32
    %4 = vector.broadcast %cst : f32 to vector<35x64xf32>
    %c0_4 = arith.constant 0 : index
    %c0_5 = arith.constant 0 : index
    %5 = tpu.strided_load %arg11[%c0_4, %c0_5] {strides = array<i32: 7, 1>} : memref<256x64xf32, #tpu.memory_space<vmem>>, vector<35x64xf32>
    %6 = arith.truncf %5 : vector<35x64xf32> to vector<35x64xbf16>
    %c0_6 = arith.constant 0 : index
    %c0_7 = arith.constant 0 : index
    %7 = vector.load %arg2[%c0_6, %c0_7] : memref<960x64xbf16, #tpu.memory_space<vmem>>, vector<64x64xbf16>
    %cst_8 = arith.constant dense<0.000000e+00> : vector<35x64xf32>
    %8 = tpu.matmul %6, %7, %cst_8 {dimension_numbers = #tpu.dot_dimension_numbers<[1], [0], [0], [1], [0, 0, 1, 1], [], []>} : vector<35x64xbf16>, vector<64x64xbf16>, vector<35x64xf32> -> vector<35x64xf32>
    %9 = arith.addf %4, %8 : vector<35x64xf32>
    %c1 = arith.constant 1 : index
    %c0_9 = arith.constant 0 : index
    %10 = tpu.strided_load %arg11[%c1, %c0_9] {strides = array<i32: 7, 1>} : memref<256x64xf32, #tpu.memory_space<vmem>>, vector<35x64xf32>
    %11 = arith.truncf %10 : vector<35x64xf32> to vector<35x64xbf16>
    %c64 = arith.constant 64 : index
    %c0_10 = arith.constant 0 : index
    %12 = vector.load %arg2[%c64, %c0_10] : memref<960x64xbf16, #tpu.memory_space<vmem>>, vector<64x64xbf16>
    %cst_11 = arith.constant dense<0.000000e+00> : vector<35x64xf32>
    %13 = tpu.matmul %11, %12, %cst_11 {dimension_numbers = #tpu.dot_dimension_numbers<[1], [0], [0], [1], [0, 0, 1, 1], [], []>} : vector<35x64xbf16>, vector<64x64xbf16>, vector<35x64xf32> -> vector<35x64xf32>
    %14 = arith.addf %9, %13 : vector<35x64xf32>
    %c2 = arith.constant 2 : index
    %c0_12 = arith.constant 0 : index
    %15 = tpu.strided_load %arg11[%c2, %c0_12] {strides = array<i32: 7, 1>} : memref<256x64xf32, #tpu.memory_space<vmem>>, vector<35x64xf32>
    %16 = arith.truncf %15 : vector<35x64xf32> to vector<35x64xbf16>
    %c128 = arith.constant 128 : index
    %c0_13 = arith.constant 0 : index
    %17 = vector.load %arg2[%c128, %c0_13] : memref<960x64xbf16, #tpu.memory_space<vmem>>, vector<64x64xbf16>
    %cst_14 = arith.constant dense<0.000000e+00> : vector<35x64xf32>
    %18 = tpu.matmul %16, %17, %cst_14 {dimension_numbers = #tpu.dot_dimension_numbers<[1], [0], [0], [1], [0, 0, 1, 1], [], []>} : vector<35x64xbf16>, vector<64x64xbf16>, vector<35x64xf32> -> vector<35x64xf32>
    %19 = arith.addf %14, %18 : vector<35x64xf32>
    %c3 = arith.constant 3 : index
    %c0_15 = arith.constant 0 : index
    %20 = tpu.strided_load %arg11[%c3, %c0_15] {strides = array<i32: 7, 1>} : memref<256x64xf32, #tpu.memory_space<vmem>>, vector<35x64xf32>
    %21 = arith.truncf %20 : vector<35x64xf32> to vector<35x64xbf16>
    %c192 = arith.constant 192 : index
    %c0_16 = arith.constant 0 : index
    %22 = vector.load %arg2[%c192, %c0_16] : memref<960x64xbf16, #tpu.memory_space<vmem>>, vector<64x64xbf16>
    %cst_17 = arith.constant dense<0.000000e+00> : vector<35x64xf32>
    %23 = tpu.matmul %21, %22, %cst_17 {dimension_numbers = #tpu.dot_dimension_numbers<[1], [0], [0], [1], [0, 0, 1, 1], [], []>} : vector<35x64xbf16>, vector<64x64xbf16>, vector<35x64xf32> -> vector<35x64xf32>
    %24 = arith.addf %19, %23 : vector<35x64xf32>
    %c4 = arith.constant 4 : index
    %c0_18 = arith.constant 0 : index
    %25 = tpu.strided_load %arg11[%c4, %c0_18] {strides = array<i32: 7, 1>} : memref<256x64xf32, #tpu.memory_space<vmem>>, vector<35x64xf32>
    %26 = arith.truncf %25 : vector<35x64xf32> to vector<35x64xbf16>
    %c256 = arith.constant 256 : index
    %c0_19 = arith.constant 0 : index
    %27 = vector.load %arg2[%c256, %c0_19] : memref<960x64xbf16, #tpu.memory_space<vmem>>, vector<64x64xbf16>
    %cst_20 = arith.constant dense<0.000000e+00> : vector<35x64xf32>
    %28 = tpu.matmul %26, %27, %cst_20 {dimension_numbers = #tpu.dot_dimension_numbers<[1], [0], [0], [1], [0, 0, 1, 1], [], []>} : vector<35x64xbf16>, vector<64x64xbf16>, vector<35x64xf32> -> vector<35x64xf32>
    %29 = arith.addf %24, %28 : vector<35x64xf32>
    %c5 = arith.constant 5 : index
    %c0_21 = arith.constant 0 : index
    %30 = tpu.strided_load %arg11[%c5, %c0_21] {strides = array<i32: 7, 1>} : memref<256x64xf32, #tpu.memory_space<vmem>>, vector<35x64xf32>
    %31 = arith.truncf %30 : vector<35x64xf32> to vector<35x64xbf16>
    %c320 = arith.constant 320 : index
    %c0_22 = arith.constant 0 : index
    %32 = vector.load %arg2[%c320, %c0_22] : memref<960x64xbf16, #tpu.memory_space<vmem>>, vector<64x64xbf16>
    %cst_23 = arith.constant dense<0.000000e+00> : vector<35x64xf32>
    %33 = tpu.matmul %31, %32, %cst_23 {dimension_numbers = #tpu.dot_dimension_numbers<[1], [0], [0], [1], [0, 0, 1, 1], [], []>} : vector<35x64xbf16>, vector<64x64xbf16>, vector<35x64xf32> -> vector<35x64xf32>
    %34 = arith.addf %29, %33 : vector<35x64xf32>
    %c6 = arith.constant 6 : index
    %c0_24 = arith.constant 0 : index
    %35 = tpu.strided_load %arg11[%c6, %c0_24] {strides = array<i32: 7, 1>} : memref<256x64xf32, #tpu.memory_space<vmem>>, vector<35x64xf32>
    %36 = arith.truncf %35 : vector<35x64xf32> to vector<35x64xbf16>
    %c384 = arith.constant 384 : index
    %c0_25 = arith.constant 0 : index
    %37 = vector.load %arg2[%c384, %c0_25] : memref<960x64xbf16, #tpu.memory_space<vmem>>, vector<64x64xbf16>
    %cst_26 = arith.constant dense<0.000000e+00> : vector<35x64xf32>
    %38 = tpu.matmul %36, %37, %cst_26 {dimension_numbers = #tpu.dot_dimension_numbers<[1], [0], [0], [1], [0, 0, 1, 1], [], []>} : vector<35x64xbf16>, vector<64x64xbf16>, vector<35x64xf32> -> vector<35x64xf32>
    %39 = arith.addf %34, %38 : vector<35x64xf32>
    %c7 = arith.constant 7 : index
    %c0_27 = arith.constant 0 : index
    %40 = tpu.strided_load %arg11[%c7, %c0_27] {strides = array<i32: 7, 1>} : memref<256x64xf32, #tpu.memory_space<vmem>>, vector<35x64xf32>
    %41 = arith.truncf %40 : vector<35x64xf32> to vector<35x64xbf16>
    %c448 = arith.constant 448 : index
    %c0_28 = arith.constant 0 : index
    %42 = vector.load %arg2[%c448, %c0_28] : memref<960x64xbf16, #tpu.memory_space<vmem>>, vector<64x64xbf16>
    %cst_29 = arith.constant dense<0.000000e+00> : vector<35x64xf32>
    %43 = tpu.matmul %41, %42, %cst_29 {dimension_numbers = #tpu.dot_dimension_numbers<[1], [0], [0], [1], [0, 0, 1, 1], [], []>} : vector<35x64xbf16>, vector<64x64xbf16>, vector<35x64xf32> -> vector<35x64xf32>
    %44 = arith.addf %39, %43 : vector<35x64xf32>
    %c8 = arith.constant 8 : index
    %c0_30 = arith.constant 0 : index
    %45 = tpu.strided_load %arg11[%c8, %c0_30] {strides = array<i32: 7, 1>} : memref<256x64xf32, #tpu.memory_space<vmem>>, vector<35x64xf32>
    %46 = arith.truncf %45 : vector<35x64xf32> to vector<35x64xbf16>
    %c512 = arith.constant 512 : index
    %c0_31 = arith.constant 0 : index
    %47 = vector.load %arg2[%c512, %c0_31] : memref<960x64xbf16, #tpu.memory_space<vmem>>, vector<64x64xbf16>
    %cst_32 = arith.constant dense<0.000000e+00> : vector<35x64xf32>
    %48 = tpu.matmul %46, %47, %cst_32 {dimension_numbers = #tpu.dot_dimension_numbers<[1], [0], [0], [1], [0, 0, 1, 1], [], []>} : vector<35x64xbf16>, vector<64x64xbf16>, vector<35x64xf32> -> vector<35x64xf32>
    %49 = arith.addf %44, %48 : vector<35x64xf32>
    %c9 = arith.constant 9 : index
    %c0_33 = arith.constant 0 : index
    %50 = tpu.strided_load %arg11[%c9, %c0_33] {strides = array<i32: 7, 1>} : memref<256x64xf32, #tpu.memory_space<vmem>>, vector<35x64xf32>
    %51 = arith.truncf %50 : vector<35x64xf32> to vector<35x64xbf16>
    %c576 = arith.constant 576 : index
    %c0_34 = arith.constant 0 : index
    %52 = vector.load %arg2[%c576, %c0_34] : memref<960x64xbf16, #tpu.memory_space<vmem>>, vector<64x64xbf16>
    %cst_35 = arith.constant dense<0.000000e+00> : vector<35x64xf32>
    %53 = tpu.matmul %51, %52, %cst_35 {dimension_numbers = #tpu.dot_dimension_numbers<[1], [0], [0], [1], [0, 0, 1, 1], [], []>} : vector<35x64xbf16>, vector<64x64xbf16>, vector<35x64xf32> -> vector<35x64xf32>
    %54 = arith.addf %49, %53 : vector<35x64xf32>
    %c10 = arith.constant 10 : index
    %c0_36 = arith.constant 0 : index
    %55 = tpu.strided_load %arg11[%c10, %c0_36] {strides = array<i32: 7, 1>} : memref<256x64xf32, #tpu.memory_space<vmem>>, vector<35x64xf32>
    %56 = arith.truncf %55 : vector<35x64xf32> to vector<35x64xbf16>
    %c640 = arith.constant 640 : index
    %c0_37 = arith.constant 0 : index
    %57 = vector.load %arg2[%c640, %c0_37] : memref<960x64xbf16, #tpu.memory_space<vmem>>, vector<64x64xbf16>
    %cst_38 = arith.constant dense<0.000000e+00> : vector<35x64xf32>
    %58 = tpu.matmul %56, %57, %cst_38 {dimension_numbers = #tpu.dot_dimension_numbers<[1], [0], [0], [1], [0, 0, 1, 1], [], []>} : vector<35x64xbf16>, vector<64x64xbf16>, vector<35x64xf32> -> vector<35x64xf32>
    %59 = arith.addf %54, %58 : vector<35x64xf32>
    %c11 = arith.constant 11 : index
    %c0_39 = arith.constant 0 : index
    %60 = tpu.strided_load %arg11[%c11, %c0_39] {strides = array<i32: 7, 1>} : memref<256x64xf32, #tpu.memory_space<vmem>>, vector<35x64xf32>
    %61 = arith.truncf %60 : vector<35x64xf32> to vector<35x64xbf16>
    %c704 = arith.constant 704 : index
    %c0_40 = arith.constant 0 : index
    %62 = vector.load %arg2[%c704, %c0_40] : memref<960x64xbf16, #tpu.memory_space<vmem>>, vector<64x64xbf16>
    %cst_41 = arith.constant dense<0.000000e+00> : vector<35x64xf32>
    %63 = tpu.matmul %61, %62, %cst_41 {dimension_numbers = #tpu.dot_dimension_numbers<[1], [0], [0], [1], [0, 0, 1, 1], [], []>} : vector<35x64xbf16>, vector<64x64xbf16>, vector<35x64xf32> -> vector<35x64xf32>
    %64 = arith.addf %59, %63 : vector<35x64xf32>
    %c12 = arith.constant 12 : index
    %c0_42 = arith.constant 0 : index
    %65 = tpu.strided_load %arg11[%c12, %c0_42] {strides = array<i32: 7, 1>} : memref<256x64xf32, #tpu.memory_space<vmem>>, vector<35x64xf32>
    %66 = arith.truncf %65 : vector<35x64xf32> to vector<35x64xbf16>
    %c768 = arith.constant 768 : index
    %c0_43 = arith.constant 0 : index
    %67 = vector.load %arg2[%c768, %c0_43] : memref<960x64xbf16, #tpu.memory_space<vmem>>, vector<64x64xbf16>
    %cst_44 = arith.constant dense<0.000000e+00> : vector<35x64xf32>
    %68 = tpu.matmul %66, %67, %cst_44 {dimension_numbers = #tpu.dot_dimension_numbers<[1], [0], [0], [1], [0, 0, 1, 1], [], []>} : vector<35x64xbf16>, vector<64x64xbf16>, vector<35x64xf32> -> vector<35x64xf32>
    %69 = arith.addf %64, %68 : vector<35x64xf32>
    %c13 = arith.constant 13 : index
    %c0_45 = arith.constant 0 : index
    %70 = tpu.strided_load %arg11[%c13, %c0_45] {strides = array<i32: 7, 1>} : memref<256x64xf32, #tpu.memory_space<vmem>>, vector<35x64xf32>
    %71 = arith.truncf %70 : vector<35x64xf32> to vector<35x64xbf16>
    %c832 = arith.constant 832 : index
    %c0_46 = arith.constant 0 : index
    %72 = vector.load %arg2[%c832, %c0_46] : memref<960x64xbf16, #tpu.memory_space<vmem>>, vector<64x64xbf16>
    %cst_47 = arith.constant dense<0.000000e+00> : vector<35x64xf32>
    %73 = tpu.matmul %71, %72, %cst_47 {dimension_numbers = #tpu.dot_dimension_numbers<[1], [0], [0], [1], [0, 0, 1, 1], [], []>} : vector<35x64xbf16>, vector<64x64xbf16>, vector<35x64xf32> -> vector<35x64xf32>
    %74 = arith.addf %69, %73 : vector<35x64xf32>
    %c14 = arith.constant 14 : index
    %c0_48 = arith.constant 0 : index
    %75 = tpu.strided_load %arg11[%c14, %c0_48] {strides = array<i32: 7, 1>} : memref<256x64xf32, #tpu.memory_space<vmem>>, vector<35x64xf32>
    %76 = arith.truncf %75 : vector<35x64xf32> to vector<35x64xbf16>
    %c896 = arith.constant 896 : index
    %c0_49 = arith.constant 0 : index
    %77 = vector.load %arg2[%c896, %c0_49] : memref<960x64xbf16, #tpu.memory_space<vmem>>, vector<64x64xbf16>
    %cst_50 = arith.constant dense<0.000000e+00> : vector<35x64xf32>
    %78 = tpu.matmul %76, %77, %cst_50 {dimension_numbers = #tpu.dot_dimension_numbers<[1], [0], [0], [1], [0, 0, 1, 1], [], []>} : vector<35x64xbf16>, vector<64x64xbf16>, vector<35x64xf32> -> vector<35x64xf32>
    %79 = arith.addf %74, %78 : vector<35x64xf32>
    %c0_51 = arith.constant 0 : index
    %c0_52 = arith.constant 0 : index
    %80 = vector.load %arg3[%c0_51, %c0_52] : memref<1x64xf32, #tpu.memory_space<vmem>>, vector<1x64xf32>
    %81 = vector.broadcast %80 : vector<1x64xf32> to vector<35x64xf32>
    %82 = arith.addf %79, %81 : vector<35x64xf32>
    %83 = vector.extract_strided_slice %82 {offsets = [0, 0], sizes = [35, 32], strides = [1, 1]} : vector<35x64xf32> to vector<35x32xf32>
    %84 = vector.extract_strided_slice %82 {offsets = [0, 32], sizes = [35, 32], strides = [1, 1]} : vector<35x64xf32> to vector<35x32xf32>
    %85 = arith.negf %84 : vector<35x32xf32>
    %86 = math.exp %85 : vector<35x32xf32>
    %cst_53 = arith.constant 1.000000e+00 : f32
    %87 = vector.broadcast %cst_53 : f32 to vector<35x32xf32>
    %88 = arith.addf %87, %86 : vector<35x32xf32>
    %89 = arith.divf %87, %88 : vector<35x32xf32>
    %90 = arith.mulf %83, %89 : vector<35x32xf32>
    %c0_54 = arith.constant 0 : index
    %c0_55 = arith.constant 0 : index
    %91 = vector.load %arg12[%c0_54, %c0_55] : memref<35x32xf32, #tpu.memory_space<vmem>>, vector<35x32xf32>
    tpu.vector_store %arg12[%c0_54, %c0_55], %90 {strides = array<i32>} : memref<35x32xf32, #tpu.memory_space<vmem>>, vector<35x32xf32>,
    %cst_56 = arith.constant 0.000000e+00 : f32
    %92 = vector.broadcast %cst_56 : f32 to vector<3x128xf32>
    %c0_57 = arith.constant 0 : index
    %c0_58 = arith.constant 0 : index
    %93 = tpu.strided_load %arg12[%c0_57, %c0_58] {strides = array<i32: 7, 1>} : memref<35x32xf32, #tpu.memory_space<vmem>>, vector<3x32xf32>
    %94 = arith.truncf %93 : vector<3x32xf32> to vector<3x32xbf16>
    %c0_59 = arith.constant 0 : index
    %c0_60 = arith.constant 0 : index
    %95 = vector.load %arg4[%c0_59, %c0_60] : memref<480x128xbf16, #tpu.memory_space<vmem>>, vector<32x128xbf16>
    %cst_61 = arith.constant dense<0.000000e+00> : vector<3x128xf32>
    %96 = tpu.matmul %94, %95, %cst_61 {dimension_numbers = #tpu.dot_dimension_numbers<[1], [0], [0], [1], [0, 0, 1, 1], [], []>} : vector<3x32xbf16>, vector<32x128xbf16>, vector<3x128xf32> -> vector<3x128xf32>
    %97 = arith.addf %92, %96 : vector<3x128xf32>
    %c1_62 = arith.constant 1 : index
    %c0_63 = arith.constant 0 : index
    %98 = tpu.strided_load %arg12[%c1_62, %c0_63] {strides = array<i32: 7, 1>} : memref<35x32xf32, #tpu.memory_space<vmem>>, vector<3x32xf32>
    %99 = arith.truncf %98 : vector<3x32xf32> to vector<3x32xbf16>
    %c32 = arith.constant 32 : index
    %c0_64 = arith.constant 0 : index
    %100 = vector.load %arg4[%c32, %c0_64] : memref<480x128xbf16, #tpu.memory_space<vmem>>, vector<32x128xbf16>
    %cst_65 = arith.constant dense<0.000000e+00> : vector<3x128xf32>
    %101 = tpu.matmul %99, %100, %cst_65 {dimension_numbers = #tpu.dot_dimension_numbers<[1], [0], [0], [1], [0, 0, 1, 1], [], []>} : vector<3x32xbf16>, vector<32x128xbf16>, vector<3x128xf32> -> vector<3x128xf32>
    %102 = arith.addf %97, %101 : vector<3x128xf32>
    %c2_66 = arith.constant 2 : index
    %c0_67 = arith.constant 0 : index
    %103 = tpu.strided_load %arg12[%c2_66, %c0_67] {strides = array<i32: 7, 1>} : memref<35x32xf32, #tpu.memory_space<vmem>>, vector<3x32xf32>
    %104 = arith.truncf %103 : vector<3x32xf32> to vector<3x32xbf16>
    %c64_68 = arith.constant 64 : index
    %c0_69 = arith.constant 0 : index
    %105 = vector.load %arg4[%c64_68, %c0_69] : memref<480x128xbf16, #tpu.memory_space<vmem>>, vector<32x128xbf16>
    %cst_70 = arith.constant dense<0.000000e+00> : vector<3x128xf32>
    %106 = tpu.matmul %104, %105, %cst_70 {dimension_numbers = #tpu.dot_dimension_numbers<[1], [0], [0], [1], [0, 0, 1, 1], [], []>} : vector<3x32xbf16>, vector<32x128xbf16>, vector<3x128xf32> -> vector<3x128xf32>
    %107 = arith.addf %102, %106 : vector<3x128xf32>
    %c3_71 = arith.constant 3 : index
    %c0_72 = arith.constant 0 : index
    %108 = tpu.strided_load %arg12[%c3_71, %c0_72] {strides = array<i32: 7, 1>} : memref<35x32xf32, #tpu.memory_space<vmem>>, vector<3x32xf32>
    %109 = arith.truncf %108 : vector<3x32xf32> to vector<3x32xbf16>
    %c96 = arith.constant 96 : index
    %c0_73 = arith.constant 0 : index
    %110 = vector.load %arg4[%c96, %c0_73] : memref<480x128xbf16, #tpu.memory_space<vmem>>, vector<32x128xbf16>
    %cst_74 = arith.constant dense<0.000000e+00> : vector<3x128xf32>
    %111 = tpu.matmul %109, %110, %cst_74 {dimension_numbers = #tpu.dot_dimension_numbers<[1], [0], [0], [1], [0, 0, 1, 1], [], []>} : vector<3x32xbf16>, vector<32x128xbf16>, vector<3x128xf32> -> vector<3x128xf32>
    %112 = arith.addf %107, %111 : vector<3x128xf32>
    %c4_75 = arith.constant 4 : index
    %c0_76 = arith.constant 0 : index
    %113 = tpu.strided_load %arg12[%c4_75, %c0_76] {strides = array<i32: 7, 1>} : memref<35x32xf32, #tpu.memory_space<vmem>>, vector<3x32xf32>
    %114 = arith.truncf %113 : vector<3x32xf32> to vector<3x32xbf16>
    %c128_77 = arith.constant 128 : index
    %c0_78 = arith.constant 0 : index
    %115 = vector.load %arg4[%c128_77, %c0_78] : memref<480x128xbf16, #tpu.memory_space<vmem>>, vector<32x128xbf16>
    %cst_79 = arith.constant dense<0.000000e+00> : vector<3x128xf32>
    %116 = tpu.matmul %114, %115, %cst_79 {dimension_numbers = #tpu.dot_dimension_numbers<[1], [0], [0], [1], [0, 0, 1, 1], [], []>} : vector<3x32xbf16>, vector<32x128xbf16>, vector<3x128xf32> -> vector<3x128xf32>
    %117 = arith.addf %112, %116 : vector<3x128xf32>
    %c5_80 = arith.constant 5 : index
    %c0_81 = arith.constant 0 : index
    %118 = tpu.strided_load %arg12[%c5_80, %c0_81] {strides = array<i32: 7, 1>} : memref<35x32xf32, #tpu.memory_space<vmem>>, vector<3x32xf32>
    %119 = arith.truncf %118 : vector<3x32xf32> to vector<3x32xbf16>
    %c160 = arith.constant 160 : index
    %c0_82 = arith.constant 0 : index
    %120 = vector.load %arg4[%c160, %c0_82] : memref<480x128xbf16, #tpu.memory_space<vmem>>, vector<32x128xbf16>
    %cst_83 = arith.constant dense<0.000000e+00> : vector<3x128xf32>
    %121 = tpu.matmul %119, %120, %cst_83 {dimension_numbers = #tpu.dot_dimension_numbers<[1], [0], [0], [1], [0, 0, 1, 1], [], []>} : vector<3x32xbf16>, vector<32x128xbf16>, vector<3x128xf32> -> vector<3x128xf32>
    %122 = arith.addf %117, %121 : vector<3x128xf32>
    %c6_84 = arith.constant 6 : index
    %c0_85 = arith.constant 0 : index
    %123 = tpu.strided_load %arg12[%c6_84, %c0_85] {strides = array<i32: 7, 1>} : memref<35x32xf32, #tpu.memory_space<vmem>>, vector<3x32xf32>
    %124 = arith.truncf %123 : vector<3x32xf32> to vector<3x32xbf16>
    %c192_86 = arith.constant 192 : index
    %c0_87 = arith.constant 0 : index
    %125 = vector.load %arg4[%c192_86, %c0_87] : memref<480x128xbf16, #tpu.memory_space<vmem>>, vector<32x128xbf16>
    %cst_88 = arith.constant dense<0.000000e+00> : vector<3x128xf32>
    %126 = tpu.matmul %124, %125, %cst_88 {dimension_numbers = #tpu.dot_dimension_numbers<[1], [0], [0], [1], [0, 0, 1, 1], [], []>} : vector<3x32xbf16>, vector<32x128xbf16>, vector<3x128xf32> -> vector<3x128xf32>
    %127 = arith.addf %122, %126 : vector<3x128xf32>
    %c7_89 = arith.constant 7 : index
    %c0_90 = arith.constant 0 : index
    %128 = tpu.strided_load %arg12[%c7_89, %c0_90] {strides = array<i32: 7, 1>} : memref<35x32xf32, #tpu.memory_space<vmem>>, vector<3x32xf32>
    %129 = arith.truncf %128 : vector<3x32xf32> to vector<3x32xbf16>
    %c224 = arith.constant 224 : index
    %c0_91 = arith.constant 0 : index
    %130 = vector.load %arg4[%c224, %c0_91] : memref<480x128xbf16, #tpu.memory_space<vmem>>, vector<32x128xbf16>
    %cst_92 = arith.constant dense<0.000000e+00> : vector<3x128xf32>
    %131 = tpu.matmul %129, %130, %cst_92 {dimension_numbers = #tpu.dot_dimension_numbers<[1], [0], [0], [1], [0, 0, 1, 1], [], []>} : vector<3x32xbf16>, vector<32x128xbf16>, vector<3x128xf32> -> vector<3x128xf32>
    %132 = arith.addf %127, %131 : vector<3x128xf32>
    %c8_93 = arith.constant 8 : index
    %c0_94 = arith.constant 0 : index
    %133 = tpu.strided_load %arg12[%c8_93, %c0_94] {strides = array<i32: 7, 1>} : memref<35x32xf32, #tpu.memory_space<vmem>>, vector<3x32xf32>
    %134 = arith.truncf %133 : vector<3x32xf32> to vector<3x32xbf16>
    %c256_95 = arith.constant 256 : index
    %c0_96 = arith.constant 0 : index
    %135 = vector.load %arg4[%c256_95, %c0_96] : memref<480x128xbf16, #tpu.memory_space<vmem>>, vector<32x128xbf16>
    %cst_97 = arith.constant dense<0.000000e+00> : vector<3x128xf32>
    %136 = tpu.matmul %134, %135, %cst_97 {dimension_numbers = #tpu.dot_dimension_numbers<[1], [0], [0], [1], [0, 0, 1, 1], [], []>} : vector<3x32xbf16>, vector<32x128xbf16>, vector<3x128xf32> -> vector<3x128xf32>
    %137 = arith.addf %132, %136 : vector<3x128xf32>
    %c9_98 = arith.constant 9 : index
    %c0_99 = arith.constant 0 : index
    %138 = tpu.strided_load %arg12[%c9_98, %c0_99] {strides = array<i32: 7, 1>} : memref<35x32xf32, #tpu.memory_space<vmem>>, vector<3x32xf32>
    %139 = arith.truncf %138 : vector<3x32xf32> to vector<3x32xbf16>
    %c288 = arith.constant 288 : index
    %c0_100 = arith.constant 0 : index
    %140 = vector.load %arg4[%c288, %c0_100] : memref<480x128xbf16, #tpu.memory_space<vmem>>, vector<32x128xbf16>
    %cst_101 = arith.constant dense<0.000000e+00> : vector<3x128xf32>
    %141 = tpu.matmul %139, %140, %cst_101 {dimension_numbers = #tpu.dot_dimension_numbers<[1], [0], [0], [1], [0, 0, 1, 1], [], []>} : vector<3x32xbf16>, vector<32x128xbf16>, vector<3x128xf32> -> vector<3x128xf32>
    %142 = arith.addf %137, %141 : vector<3x128xf32>
    %c10_102 = arith.constant 10 : index
    %c0_103 = arith.constant 0 : index
    %143 = tpu.strided_load %arg12[%c10_102, %c0_103] {strides = array<i32: 7, 1>} : memref<35x32xf32, #tpu.memory_space<vmem>>, vector<3x32xf32>
    %144 = arith.truncf %143 : vector<3x32xf32> to vector<3x32xbf16>
    %c320_104 = arith.constant 320 : index
    %c0_105 = arith.constant 0 : index
    %145 = vector.load %arg4[%c320_104, %c0_105] : memref<480x128xbf16, #tpu.memory_space<vmem>>, vector<32x128xbf16>
    %cst_106 = arith.constant dense<0.000000e+00> : vector<3x128xf32>
    %146 = tpu.matmul %144, %145, %cst_106 {dimension_numbers = #tpu.dot_dimension_numbers<[1], [0], [0], [1], [0, 0, 1, 1], [], []>} : vector<3x32xbf16>, vector<32x128xbf16>, vector<3x128xf32> -> vector<3x128xf32>
    %147 = arith.addf %142, %146 : vector<3x128xf32>
    %c11_107 = arith.constant 11 : index
    %c0_108 = arith.constant 0 : index
    %148 = tpu.strided_load %arg12[%c11_107, %c0_108] {strides = array<i32: 7, 1>} : memref<35x32xf32, #tpu.memory_space<vmem>>, vector<3x32xf32>
    %149 = arith.truncf %148 : vector<3x32xf32> to vector<3x32xbf16>
    %c352 = arith.constant 352 : index
    %c0_109 = arith.constant 0 : index
    %150 = vector.load %arg4[%c352, %c0_109] : memref<480x128xbf16, #tpu.memory_space<vmem>>, vector<32x128xbf16>
    %cst_110 = arith.constant dense<0.000000e+00> : vector<3x128xf32>
    %151 = tpu.matmul %149, %150, %cst_110 {dimension_numbers = #tpu.dot_dimension_numbers<[1], [0], [0], [1], [0, 0, 1, 1], [], []>} : vector<3x32xbf16>, vector<32x128xbf16>, vector<3x128xf32> -> vector<3x128xf32>
    %152 = arith.addf %147, %151 : vector<3x128xf32>
    %c12_111 = arith.constant 12 : index
    %c0_112 = arith.constant 0 : index
    %153 = tpu.strided_load %arg12[%c12_111, %c0_112] {strides = array<i32: 7, 1>} : memref<35x32xf32, #tpu.memory_space<vmem>>, vector<3x32xf32>
    %154 = arith.truncf %153 : vector<3x32xf32> to vector<3x32xbf16>
    %c384_113 = arith.constant 384 : index
    %c0_114 = arith.constant 0 : index
    %155 = vector.load %arg4[%c384_113, %c0_114] : memref<480x128xbf16, #tpu.memory_space<vmem>>, vector<32x128xbf16>
    %cst_115 = arith.constant dense<0.000000e+00> : vector<3x128xf32>
    %156 = tpu.matmul %154, %155, %cst_115 {dimension_numbers = #tpu.dot_dimension_numbers<[1], [0], [0], [1], [0, 0, 1, 1], [], []>} : vector<3x32xbf16>, vector<32x128xbf16>, vector<3x128xf32> -> vector<3x128xf32>
    %157 = arith.addf %152, %156 : vector<3x128xf32>
    %c13_116 = arith.constant 13 : index
    %c0_117 = arith.constant 0 : index
    %158 = tpu.strided_load %arg12[%c13_116, %c0_117] {strides = array<i32: 7, 1>} : memref<35x32xf32, #tpu.memory_space<vmem>>, vector<3x32xf32>
    %159 = arith.truncf %158 : vector<3x32xf32> to vector<3x32xbf16>
    %c416 = arith.constant 416 : index
    %c0_118 = arith.constant 0 : index
    %160 = vector.load %arg4[%c416, %c0_118] : memref<480x128xbf16, #tpu.memory_space<vmem>>, vector<32x128xbf16>
    %cst_119 = arith.constant dense<0.000000e+00> : vector<3x128xf32>
    %161 = tpu.matmul %159, %160, %cst_119 {dimension_numbers = #tpu.dot_dimension_numbers<[1], [0], [0], [1], [0, 0, 1, 1], [], []>} : vector<3x32xbf16>, vector<32x128xbf16>, vector<3x128xf32> -> vector<3x128xf32>
    %162 = arith.addf %157, %161 : vector<3x128xf32>
    %c14_120 = arith.constant 14 : index
    %c0_121 = arith.constant 0 : index
    %163 = tpu.strided_load %arg12[%c14_120, %c0_121] {strides = array<i32: 7, 1>} : memref<35x32xf32, #tpu.memory_space<vmem>>, vector<3x32xf32>
    %164 = arith.truncf %163 : vector<3x32xf32> to vector<3x32xbf16>
    %c448_122 = arith.constant 448 : index
    %c0_123 = arith.constant 0 : index
    %165 = vector.load %arg4[%c448_122, %c0_123] : memref<480x128xbf16, #tpu.memory_space<vmem>>, vector<32x128xbf16>
    %cst_124 = arith.constant dense<0.000000e+00> : vector<3x128xf32>
    %166 = tpu.matmul %164, %165, %cst_124 {dimension_numbers = #tpu.dot_dimension_numbers<[1], [0], [0], [1], [0, 0, 1, 1], [], []>} : vector<3x32xbf16>, vector<32x128xbf16>, vector<3x128xf32> -> vector<3x128xf32>
    %167 = arith.addf %162, %166 : vector<3x128xf32>
    %c0_125 = arith.constant 0 : index
    %c0_126 = arith.constant 0 : index
    %168 = vector.load %arg5[%c0_125, %c0_126] : memref<1x128xf32, #tpu.memory_space<vmem>>, vector<1x128xf32>
    %169 = vector.broadcast %168 : vector<1x128xf32> to vector<3x128xf32>
    %170 = arith.addf %167, %169 : vector<3x128xf32>
    %171 = vector.extract_strided_slice %170 {offsets = [0, 0], sizes = [3, 64], strides = [1, 1]} : vector<3x128xf32> to vector<3x64xf32>
    %172 = vector.extract_strided_slice %170 {offsets = [0, 64], sizes = [3, 64], strides = [1, 1]} : vector<3x128xf32> to vector<3x64xf32>
    %173 = arith.negf %172 : vector<3x64xf32>
    %174 = math.exp %173 : vector<3x64xf32>
    %cst_127 = arith.constant 1.000000e+00 : f32
    %175 = vector.broadcast %cst_127 : f32 to vector<3x64xf32>
    %176 = arith.addf %175, %174 : vector<3x64xf32>
    %177 = arith.divf %175, %176 : vector<3x64xf32>
    %178 = arith.mulf %171, %177 : vector<3x64xf32>
    %cst_128 = arith.constant dense<0.000000e+00> : vector<64xf32>
    %179 = vector.multi_reduction <add>, %178, %cst_128 [0] : vector<3x64xf32> to vector<64xf32>
    %180 = vector.shape_cast %179 : vector<64xf32> to vector<1x64xf32>
    %cst_129 = arith.constant 3.000000e+00 : f32
    %181 = vector.broadcast %cst_129 : f32 to vector<1x64xf32>
    %182 = arith.divf %180, %181 : vector<1x64xf32>
    %183 = arith.truncf %182 : vector<1x64xf32> to vector<1x64xbf16>
    %c0_130 = arith.constant 0 : index
    %c0_131 = arith.constant 0 : index
    %184 = vector.load %arg6[%c0_130, %c0_131] : memref<64x128xbf16, #tpu.memory_space<vmem>>, vector<64x128xbf16>
    %cst_132 = arith.constant dense<0.000000e+00> : vector<1x128xf32>
    %185 = tpu.matmul %183, %184, %cst_132 {dimension_numbers = #tpu.dot_dimension_numbers<[1], [0], [0], [1], [0, 0, 1, 1], [], []>} : vector<1x64xbf16>, vector<64x128xbf16>, vector<1x128xf32> -> vector<1x128xf32>
    %c0_133 = arith.constant 0 : index
    %c0_134 = arith.constant 0 : index
    %186 = vector.load %arg7[%c0_133, %c0_134] : memref<1x128xf32, #tpu.memory_space<vmem>>, vector<1x128xf32>
    %187 = arith.addf %185, %186 : vector<1x128xf32>
    %188 = arith.truncf %187 : vector<1x128xf32> to vector<1x128xbf16>
    %c0_135 = arith.constant 0 : index
    %c0_136 = arith.constant 0 : index
    %189 = vector.load %arg8[%c0_135, %c0_136] : memref<128x128xbf16, #tpu.memory_space<vmem>>, vector<128x128xbf16>
    %cst_137 = arith.constant dense<0.000000e+00> : vector<1x128xf32>
    %190 = tpu.matmul %188, %189, %cst_137 {dimension_numbers = #tpu.dot_dimension_numbers<[1], [0], [0], [1], [0, 0, 1, 1], [], []>} : vector<1x128xbf16>, vector<128x128xbf16>, vector<1x128xf32> -> vector<1x128xf32>
    %c0_138 = arith.constant 0 : index
    %c0_139 = arith.constant 0 : index
    %191 = vector.load %arg9[%c0_138, %c0_139] : memref<1x128xf32, #tpu.memory_space<vmem>>, vector<1x128xf32>
    %192 = arith.addf %190, %191 : vector<1x128xf32>
    %c0_140 = arith.constant 0 : index
    %c0_141 = arith.constant 0 : index
    %c0_142 = arith.constant 0 : index
    %193 = vector.load %arg10[%c0_140, %c0_141, %c0_142] : memref<1x1x128xf32, #tpu.memory_space<vmem>>, vector<1x1x128xf32>
    %194 = vector.shape_cast %193 : vector<1x1x128xf32> to vector<1x128xf32>
    %195 = vector.shape_cast %192 : vector<1x128xf32> to vector<1x1x128xf32>
    tpu.vector_store %arg10[%c0_140, %c0_141, %c0_142], %195 {strides = array<i32>} : memref<1x1x128xf32, #tpu.memory_space<vmem>>, vector<1x1x128xf32>,
    return
  }
  func.func @transform_0(%arg0: i32) -> (i32, i32, i32) {
    %c0_i32 = arith.constant 0 : i32
    %c0_i32_0 = arith.constant 0 : i32
    %c0_i32_1 = arith.constant 0 : i32
    return %arg0, %c0_i32, %c0_i32_0 : i32, i32, i32
  }
  func.func @transform_1(%arg0: i32) -> (i32, i32) {
    %c0_i32 = arith.constant 0 : i32
    %c0_i32_0 = arith.constant 0 : i32
    %c0_i32_1 = arith.constant 0 : i32
    return %c0_i32, %c0_i32_0 : i32, i32
  }
  func.func @transform_2(%arg0: i32) -> (i32, i32) {
    %c0_i32 = arith.constant 0 : i32
    %c0_i32_0 = arith.constant 0 : i32
    %c0_i32_1 = arith.constant 0 : i32
    return %c0_i32, %c0_i32_0 : i32, i32
  }
  func.func @transform_3(%arg0: i32) -> (i32, i32) {
    %c0_i32 = arith.constant 0 : i32
    %c0_i32_0 = arith.constant 0 : i32
    %c0_i32_1 = arith.constant 0 : i32
    return %c0_i32, %c0_i32_0 : i32, i32
  }
  func.func @transform_4(%arg0: i32) -> (i32, i32) {
    %c0_i32 = arith.constant 0 : i32
    %c0_i32_0 = arith.constant 0 : i32
    %c0_i32_1 = arith.constant 0 : i32
    return %c0_i32, %c0_i32_0 : i32, i32
  }
  func.func @transform_5(%arg0: i32) -> (i32, i32) {
    %c0_i32 = arith.constant 0 : i32
    %c0_i32_0 = arith.constant 0 : i32
    %c0_i32_1 = arith.constant 0 : i32
    return %c0_i32, %c0_i32_0 : i32, i32
  }
  func.func @transform_6(%arg0: i32) -> (i32, i32) {
    %c0_i32 = arith.constant 0 : i32
    %c0_i32_0 = arith.constant 0 : i32
    %c0_i32_1 = arith.constant 0 : i32
    return %c0_i32, %c0_i32_0 : i32, i32
  }
  func.func @transform_7(%arg0: i32) -> (i32, i32) {
    %c0_i32 = arith.constant 0 : i32
    %c0_i32_0 = arith.constant 0 : i32
    %c0_i32_1 = arith.constant 0 : i32
    return %c0_i32, %c0_i32_0 : i32, i32
  }
  func.func @transform_8(%arg0: i32) -> (i32, i32) {
    %c0_i32 = arith.constant 0 : i32
    %c0_i32_0 = arith.constant 0 : i32
    %c0_i32_1 = arith.constant 0 : i32
    return %c0_i32, %c0_i32_0 : i32, i32
  }
  func.func @transform_9(%arg0: i32) -> (i32, i32, i32) {
    %c0_i32 = arith.constant 0 : i32
    %c0_i32_0 = arith.constant 0 : i32
    %c0_i32_1 = arith.constant 0 : i32
    return %arg0, %c0_i32, %c0_i32_0 : i32, i32, i32
  }
}

</mosaic_0001>

<llo_original>
// kernel: gcnn_forward.1
$region0: #{gcnn_forward.1}
  #allocation0 [shape = 'u32[]', space=smem, size = 0x4, offset = 0x4, fixed_abs, tag = 'smem constant byte address 0x4 - core index']
  #allocation1 [shape = 'u32[72,128]{1,0:T(1,128)}', space=vmem, size = 0x9000, scoped, tag = 'internal scratch']
  #allocation2 [shape = 'f32[256,64]{1,0:T(8,128)}', space=vmem, size = 0x20000, scoped, tag = 'scratch operand']
  #allocation3 [shape = 'f32[35,32]{1,0:T(8,128)}', space=vmem, size = 0x5000, scoped, tag = 'scratch operand']
  %s0 = inlined_call_operand.vmem [shape: bf16[2,256,64], index: 0, kind: input, shape index: {}]
  %s1 = inlined_call_operand.vmem [shape: bf16[960,64], index: 1, kind: input, shape index: {}]
  %s2 = inlined_call_operand.vmem [shape: f32[1,64], index: 2, kind: input, shape index: {}]
  %s3 = inlined_call_operand.vmem [shape: bf16[480,128], index: 3, kind: input, shape index: {}]
  %s4 = inlined_call_operand.vmem [shape: f32[1,128], index: 4, kind: input, shape index: {}]
  %s5 = inlined_call_operand.vmem [shape: bf16[64,128], index: 5, kind: input, shape index: {}]
  %s6 = inlined_call_operand.vmem [shape: f32[1,128], index: 6, kind: input, shape index: {}]
  %s7 = inlined_call_operand.vmem [shape: bf16[128,128], index: 7, kind: input, shape index: {}]
  %s8 = inlined_call_operand.vmem [shape: f32[1,128], index: 8, kind: input, shape index: {}]
  %s9 = inlined_call_operand.hbm [shape: f32[2,1,128], index: 9, kind: output, shape index: {}]
  %s10 = sld [smem:[#allocation0]]
  $region69: #{gcnn_forward.1} parent=0
    _
  %s12 = ssub.s32 1, %s10
  %s13 = scalar_select 0, %s12, %s10
  $region1: #{gcnn_forward.1} parent=0
    #allocation4 [shape = 'u8[1024]{0}', space=vmem, size = 0x400, scoped, tag = 'output window, operand 0']
    #allocation5 [shape = 's32[2]{0}', space=sflag, size = 0x8, scoped, tag = 'scoped memory for gcnn_forward.1']
    %14 = vsyncpa [#allocation5], 0
    %s15 = scalar_lea.sflag [#allocation5], 1
    %16 = vsyncpa %s15, 0
    loop: start=0, step=1, limit=4
    $region2: #{gcnn_forward.1} parent=1 // loop_pre_header
      _
    $region3: #{gcnn_forward.1} parent=1 // loop_header
      %s18 = sphi 0, %s22
      %p19 = scmp.ge.s32.totalorder %s18, 4
      %s28 = sphi 0, %s30
      %s31 = sphi 0, %s28
      %s32 = sphi 0, %s31
      %s48 = sphi 0, %s32
      %s52 = sphi 0, %s52
      %s54 = sphi 0, %s52
      %s55 = sphi 0, %s54
      %s69 = sphi 0, %s55
      %s73 = sphi 0, %s73
      %s75 = sphi 0, %s73
      %s76 = sphi 0, %s75
      %s90 = sphi 0, %s76
      %s94 = sphi 0, %s94
      %s96 = sphi 0, %s94
      %s97 = sphi 0, %s96
      %s111 = sphi 0, %s97
      %s115 = sphi 0, %s115
      %s117 = sphi 0, %s115
      %s118 = sphi 0, %s117
      %s132 = sphi 0, %s118
      %s136 = sphi 0, %s136
      %s138 = sphi 0, %s136
      %s139 = sphi 0, %s138
      %s153 = sphi 0, %s139
      %s157 = sphi 0, %s157
      %s159 = sphi 0, %s157
      %s160 = sphi 0, %s159
      %s174 = sphi 0, %s160
      %s178 = sphi 0, %s178
      %s180 = sphi 0, %s178
      %s181 = sphi 0, %s180
      %s195 = sphi 0, %s181
      %s199 = sphi 0, %s199
      %s201 = sphi 0, %s199
      %s202 = sphi 0, %s201
      %s216 = sphi 0, %s202
      %s222 = sphi 0, %s224
      %s225 = sphi 0, %s222
      %s226 = sphi 0, %s225
      %s242 = sphi 0, %s226
    $region4: #{gcnn_forward.1} parent=1 // loop_header_branch
      %21 = sbr.rel (%p19) target = $region8
    $region5: #{gcnn_forward.1} parent=1 // loop_body
      %s23 = ssub.s32 %s18, 1
      %s24 = ssub.s32 %s18, 2
      %s25 = sadd.s32 %s18, 1
      %s26 = ssub.s32 %s18, %s25
      %p27 = scmp.eq.s32.totalorder %s26, 0
      %s29 = sadd.s32 %s28, 1
      %s30 = scalar_select %p27, %s28, %s29
      %p33 = pneg %p27
      %p34 = scmp.eq.s32.totalorder %s18, 1
      %p35 = por %p33, %p34
      %p36 = scmp.ne.s32.totalorder %s28, %s31
      %p37 = scmp.eq.s32.totalorder %s18, 0
      %p38 = por %p36, %p37
      %p39 = scmp.ne.s32.totalorder %s28, %s31
      %p40 = scmp.eq.s32.totalorder %s23, 1
      %p41 = por %p39, %p40
      %p42 = scmp.ne.s32.totalorder %s31, %s32
      %p43 = scmp.eq.s32.totalorder %s23, 0
      %p44 = por %p42, %p43
      %p45 = scmp.ne.s32.totalorder %s31, %s32
      %p46 = scmp.eq.s32.totalorder %s24, 1
      %p47 = por %p45, %p46
      %p49 = scmp.ne.s32.totalorder %s32, %s48
      %p50 = scmp.eq.s32.totalorder %s24, 0
      %p51 = por %p49, %p50
      %s53 = sadd.s32 %s52, 1
      %p56 = scmp.eq.s32.totalorder %s18, 1
      %p57 = scmp.ne.s32.totalorder %s52, %s54
      %p58 = scmp.eq.s32.totalorder %s18, 0
      %p59 = por %p57, %p58
      %p60 = scmp.ne.s32.totalorder %s52, %s54
      %p61 = scmp.eq.s32.totalorder %s23, 1
      %p62 = por %p60, %p61
      %p63 = scmp.ne.s32.totalorder %s54, %s55
      %p64 = scmp.eq.s32.totalorder %s23, 0
      %p65 = por %p63, %p64
      %p66 = scmp.ne.s32.totalorder %s54, %s55
      %p67 = scmp.eq.s32.totalorder %s24, 1
      %p68 = por %p66, %p67
      %p70 = scmp.ne.s32.totalorder %s55, %s69
      %p71 = scmp.eq.s32.totalorder %s24, 0
      %p72 = por %p70, %p71
      %s74 = sadd.s32 %s73, 1
      %p77 = scmp.eq.s32.totalorder %s18, 1
      %p78 = scmp.ne.s32.totalorder %s73, %s75
      %p79 = scmp.eq.s32.totalorder %s18, 0
      %p80 = por %p78, %p79
      %p81 = scmp.ne.s32.totalorder %s73, %s75
      %p82 = scmp.eq.s32.totalorder %s23, 1
      %p83 = por %p81, %p82
      %p84 = scmp.ne.s32.totalorder %s75, %s76
      %p85 = scmp.eq.s32.totalorder %s23, 0
      %p86 = por %p84, %p85
      %p87 = scmp.ne.s32.totalorder %s75, %s76
      %p88 = scmp.eq.s32.totalorder %s24, 1
      %p89 = por %p87, %p88
      %p91 = scmp.ne.s32.totalorder %s76, %s90
      %p92 = scmp.eq.s32.totalorder %s24, 0
      %p93 = por %p91, %p92
      %s95 = sadd.s32 %s94, 1
      %p98 = scmp.eq.s32.totalorder %s18, 1
      %p99 = scmp.ne.s32.totalorder %s94, %s96
      %p100 = scmp.eq.s32.totalorder %s18, 0
      %p101 = por %p99, %p100
      %p102 = scmp.ne.s32.totalorder %s94, %s96
      %p103 = scmp.eq.s32.totalorder %s23, 1
      %p104 = por %p102, %p103
      %p105 = scmp.ne.s32.totalorder %s96, %s97
      %p106 = scmp.eq.s32.totalorder %s23, 0
      %p107 = por %p105, %p106
      %p108 = scmp.ne.s32.totalorder %s96, %s97
      %p109 = scmp.eq.s32.totalorder %s24, 1
      %p110 = por %p108, %p109
      %p112 = scmp.ne.s32.totalorder %s97, %s111
      %p113 = scmp.eq.s32.totalorder %s24, 0
      %p114 = por %p112, %p113
      %s116 = sadd.s32 %s115, 1
      %p119 = scmp.eq.s32.totalorder %s18, 1
      %p120 = scmp.ne.s32.totalorder %s115, %s117
      %p121 = scmp.eq.s32.totalorder %s18, 0
      %p122 = por %p120, %p121
      %p123 = scmp.ne.s32.totalorder %s115, %s117
      %p124 = scmp.eq.s32.totalorder %s23, 1
      %p125 = por %p123, %p124
      %p126 = scmp.ne.s32.totalorder %s117, %s118
      %p127 = scmp.eq.s32.totalorder %s23, 0
      %p128 = por %p126, %p127
      %p129 = scmp.ne.s32.totalorder %s117, %s118
      %p130 = scmp.eq.s32.totalorder %s24, 1
      %p131 = por %p129, %p130
      %p133 = scmp.ne.s32.totalorder %s118, %s132
      %p134 = scmp.eq.s32.totalorder %s24, 0
      %p135 = por %p133, %p134
      %s137 = sadd.s32 %s136, 1
      %p140 = scmp.eq.s32.totalorder %s18, 1
      %p141 = scmp.ne.s32.totalorder %s136, %s138
      %p142 = scmp.eq.s32.totalorder %s18, 0
      %p143 = por %p141, %p142
      %p144 = scmp.ne.s32.totalorder %s136, %s138
      %p145 = scmp.eq.s32.totalorder %s23, 1
      %p146 = por %p144, %p145
      %p147 = scmp.ne.s32.totalorder %s138, %s139
      %p148 = scmp.eq.s32.totalorder %s23, 0
      %p149 = por %p147, %p148
      %p150 = scmp.ne.s32.totalorder %s138, %s139
      %p151 = scmp.eq.s32.totalorder %s24, 1
      %p152 = por %p150, %p151
      %p154 = scmp.ne.s32.totalorder %s139, %s153
      %p155 = scmp.eq.s32.totalorder %s24, 0
      %p156 = por %p154, %p155
      %s158 = sadd.s32 %s157, 1
      %p161 = scmp.eq.s32.totalorder %s18, 1
      %p162 = scmp.ne.s32.totalorder %s157, %s159
      %p163 = scmp.eq.s32.totalorder %s18, 0
      %p164 = por %p162, %p163
      %p165 = scmp.ne.s32.totalorder %s157, %s159
      %p166 = scmp.eq.s32.totalorder %s23, 1
      %p167 = por %p165, %p166
      %p168 = scmp.ne.s32.totalorder %s159, %s160
      %p169 = scmp.eq.s32.totalorder %s23, 0
      %p170 = por %p168, %p169
      %p171 = scmp.ne.s32.totalorder %s159, %s160
      %p172 = scmp.eq.s32.totalorder %s24, 1
      %p173 = por %p171, %p172
      %p175 = scmp.ne.s32.totalorder %s160, %s174
      %p176 = scmp.eq.s32.totalorder %s24, 0
      %p177 = por %p175, %p176
      %s179 = sadd.s32 %s178, 1
      %p182 = scmp.eq.s32.totalorder %s18, 1
      %p183 = scmp.ne.s32.totalorder %s178, %s180
      %p184 = scmp.eq.s32.totalorder %s18, 0
      %p185 = por %p183, %p184
      %p186 = scmp.ne.s32.totalorder %s178, %s180
      %p187 = scmp.eq.s32.totalorder %s23, 1
      %p188 = por %p186, %p187
      %p189 = scmp.ne.s32.totalorder %s180, %s181
      %p190 = scmp.eq.s32.totalorder %s23, 0
      %p191 = por %p189, %p190
      %p192 = scmp.ne.s32.totalorder %s180, %s181
      %p193 = scmp.eq.s32.totalorder %s24, 1
      %p194 = por %p192, %p193
      %p196 = scmp.ne.s32.totalorder %s181, %s195
      %p197 = scmp.eq.s32.totalorder %s24, 0
      %p198 = por %p196, %p197
      %s200 = sadd.s32 %s199, 1
      %p203 = scmp.eq.s32.totalorder %s18, 1
      %p204 = scmp.ne.s32.totalorder %s199, %s201
      %p205 = scmp.eq.s32.totalorder %s18, 0
      %p206 = por %p204, %p205
      %p207 = scmp.ne.s32.totalorder %s199, %s201
      %p208 = scmp.eq.s32.totalorder %s23, 1
      %p209 = por %p207, %p208
      %p210 = scmp.ne.s32.totalorder %s201, %s202
      %p211 = scmp.eq.s32.totalorder %s23, 0
      %p212 = por %p210, %p211
      %p213 = scmp.ne.s32.totalorder %s201, %s202
      %p214 = scmp.eq.s32.totalorder %s24, 1
      %p215 = por %p213, %p214
      %p217 = scmp.ne.s32.totalorder %s202, %s216
      %p218 = scmp.eq.s32.totalorder %s24, 0
      %p219 = por %p217, %p218
      %s220 = ssub.s32 %s18, %s25
      %p221 = scmp.eq.s32.totalorder %s220, 0
      %s223 = sadd.s32 %s222, 1
      %s224 = scalar_select %p221, %s222, %s223
      %p227 = pneg %p221
      %p228 = scmp.eq.s32.totalorder %s18, 1
      %p229 = por %p227, %p228
      %p230 = scmp.ne.s32.totalorder %s222, %s225
      %p231 = scmp.eq.s32.totalorder %s18, 0
      %p232 = por %p230, %p231
      %p233 = scmp.ne.s32.totalorder %s222, %s225
      %p234 = scmp.eq.s32.totalorder %s23, 1
      %p235 = por %p233, %p234
      %p236 = scmp.ne.s32.totalorder %s225, %s226
      %p237 = scmp.eq.s32.totalorder %s23, 0
      %p238 = por %p236, %p237
      %p239 = scmp.ne.s32.totalorder %s225, %s226
      %p240 = scmp.eq.s32.totalorder %s24, 1
      %p241 = por %p239, %p240
      %p243 = scmp.ne.s32.totalorder %s226, %s242
      %p244 = scmp.eq.s32.totalorder %s24, 0
      %p245 = por %p243, %p244
      %p246 = scmp.le.s32.totalorder 1, %s18
      %p247 = scmp.lt.s32.totalorder %s18, 3
      %p248 = pnand %p246, %p247
      %p249 = pneg %p248
      // Predicated region
      $region9: #{gcnn_forward.1} parent=5 // pred_check
        _
      $region10: #{gcnn_forward.1} parent=5 // pred_check_branch
        %251 = sbr.rel (%p248) target = $region12
      $region11: #{gcnn_forward.1} parent=5 // pred_region
        %s252 = ssub.s32 %s18, 1
        // Predicated region
        $region13: #{gcnn_forward.1} parent=11 // pred_check
          %p253 = pneg %p65
        $region14: #{gcnn_forward.1} parent=11 // pred_check_branch
          %255 = sbr.rel (%p253) target = $region16
        $region15: #{gcnn_forward.1} parent=11 // pred_region
          _
        $region16: #{gcnn_forward.1} parent=11 // pred_fallthru
          _
        // Predicated region
        $region17: #{gcnn_forward.1} parent=11 // pred_check
          %p256 = pneg %p86
        $region18: #{gcnn_forward.1} parent=11 // pred_check_branch
          %258 = sbr.rel (%p256) target = $region20
        $region19: #{gcnn_forward.1} parent=11 // pred_region
          _
        $region20: #{gcnn_forward.1} parent=11 // pred_fallthru
          _
        // Predicated region
        $region21: #{gcnn_forward.1} parent=11 // pred_check
          %p259 = pneg %p107
        $region22: #{gcnn_forward.1} parent=11 // pred_check_branch
          %261 = sbr.rel (%p259) target = $region24
        $region23: #{gcnn_forward.1} parent=11 // pred_region
          _
        $region24: #{gcnn_forward.1} parent=11 // pred_fallthru
          _
        // Predicated region
        $region25: #{gcnn_forward.1} parent=11 // pred_check
          %p262 = pneg %p128
        $region26: #{gcnn_forward.1} parent=11 // pred_check_branch
          %264 = sbr.rel (%p262) target = $region28
        $region27: #{gcnn_forward.1} parent=11 // pred_region
          _
        $region28: #{gcnn_forward.1} parent=11 // pred_fallthru
          _
        // Predicated region
        $region29: #{gcnn_forward.1} parent=11 // pred_check
          %p265 = pneg %p149
        $region30: #{gcnn_forward.1} parent=11 // pred_check_branch
          %267 = sbr.rel (%p265) target = $region32
        $region31: #{gcnn_forward.1} parent=11 // pred_region
          _
        $region32: #{gcnn_forward.1} parent=11 // pred_fallthru
          _
        // Predicated region
        $region33: #{gcnn_forward.1} parent=11 // pred_check
          %p268 = pneg %p170
        $region34: #{gcnn_forward.1} parent=11 // pred_check_branch
          %270 = sbr.rel (%p268) target = $region36
        $region35: #{gcnn_forward.1} parent=11 // pred_region
          _
        $region36: #{gcnn_forward.1} parent=11 // pred_fallthru
          _
        // Predicated region
        $region37: #{gcnn_forward.1} parent=11 // pred_check
          %p271 = pneg %p191
        $region38: #{gcnn_forward.1} parent=11 // pred_check_branch
          %273 = sbr.rel (%p271) target = $region40
        $region39: #{gcnn_forward.1} parent=11 // pred_region
          _
        $region40: #{gcnn_forward.1} parent=11 // pred_fallthru
          _
        // Predicated region
        $region41: #{gcnn_forward.1} parent=11 // pred_check
          %p274 = pneg %p212
        $region42: #{gcnn_forward.1} parent=11 // pred_check_branch
          %276 = sbr.rel (%p274) target = $region44
        $region43: #{gcnn_forward.1} parent=11 // pred_region
          _
        $region44: #{gcnn_forward.1} parent=11 // pred_fallthru
          _
      $region12: #{gcnn_forward.1} parent=5 // pred_fallthru
        _
      %p277 = scmp.lt.s32.totalorder %s18, 2
      // Predicated region
      $region45: #{gcnn_forward.1} parent=5 // pred_check
        %p278 = pneg %p277
      $region46: #{gcnn_forward.1} parent=5 // pred_check_branch
        %280 = sbr.rel (%p278) target = $region48
      $region47: #{gcnn_forward.1} parent=5 // pred_region
        // Predicated region
        $region49: #{gcnn_forward.1} parent=47 // pred_check
          %p281 = pneg %p38
        $region50: #{gcnn_forward.1} parent=47 // pred_check_branch
          %283 = sbr.rel (%p281) target = $region52
        $region51: #{gcnn_forward.1} parent=47 // pred_region
          %p284 = scmp.lt.s32.totalorder %s18, 1
          %s285 = scalar_select %p284, %s18, 1
          %s286 = smul.addr %s285, 32
          %s287 = smul.addr %s286, 4
          %s288 = scalar_lea.vmem %s0, %s287
        $region52: #{gcnn_forward.1} parent=47 // pred_fallthru
          _
      $region48: #{gcnn_forward.1} parent=5 // pred_fallthru
        _
      %p289 = scmp.le.s32.totalorder 1, %s18
      %p290 = scmp.lt.s32.totalorder %s18, 3
      %p291 = pnand %p289, %p290
      %p292 = pneg %p291
      // Predicated region
      $region53: #{gcnn_forward.1} parent=5 // pred_check
        _
      $region54: #{gcnn_forward.1} parent=5 // pred_check_branch
        %294 = sbr.rel (%p291) target = $region56
      $region55: #{gcnn_forward.1} parent=5 // pred_region
        %s295 = ssub.s32 %s18, 1
        %p296 = scmp.lt.s32.totalorder %s23, 1
        %s297 = scalar_select %p296, %s23, 1
        %s298 = smul.addr %s297, 32
        %s299 = smul.addr %s298, 4
        %s300 = scalar_lea.vmem %s0, %s299
        %p301 = pneg %p44
        %p302 = pneg %p41
        %p303 = pneg %p65
        %p304 = pneg %p62
        %p305 = pneg %p86
        %p306 = pneg %p83
        %p307 = pneg %p107
        %p308 = pneg %p104
        %p309 = pneg %p128
        %p310 = pneg %p125
        %p311 = pneg %p149
        %p312 = pneg %p146
        %p313 = pneg %p170
        %p314 = pneg %p167
        %p315 = pneg %p191
        %p316 = pneg %p188
        %p317 = pneg %p212
        %p318 = pneg %p209
        %p319 = pneg %p238
        %p320 = pneg %p235
        %s321 = sand.u32 %s225, 1
        %s322 = scalar_lea.sflag [#allocation5], %s321
        %s323 = sand.u32 %s225, 1
        %s324 = scalar_lea.vmem [#allocation4], %s323
        %p325 = scmp.lt.s32.totalorder %s23, 1
        %s326 = scalar_select %p325, %s23, 1
        %s327 = smul.addr %s326, 32
        %s328 = smul.addr %s327, 4
        %s329 = scalar_lea.vmem %s0, %s328
        %v331 = vld [vmem:[%s329] sm:$0xf]
        %v332 = vld [vmem:[%s329 + $0x4] sm:$0xf]
        %v333 = vld [vmem:[%s329 + $0x8] sm:$0xf]
        %v334 = vld [vmem:[%s329 + $0xc] sm:$0xf]
        %v335 = vld [vmem:[%s329 + $0x10] sm:$0xf]
        %v336 = vld [vmem:[%s329 + $0x14] sm:$0xf]
        %v337 = vld [vmem:[%s329 + $0x18] sm:$0xf]
        %v338 = vld [vmem:[%s329 + $0x1c] sm:$0xf]
        %v339 = vld [vmem:[%s329 + $0x20] sm:$0xf]
        %v340 = vld [vmem:[%s329 + $0x24] sm:$0xf]
        %v341 = vld [vmem:[%s329 + $0x28] sm:$0xf]
        %v342 = vld [vmem:[%s329 + $0x2c] sm:$0xf]
        %v343 = vld [vmem:[%s329 + $0x30] sm:$0xf]
        %v344 = vld [vmem:[%s329 + $0x34] sm:$0xf]
        %v345 = vld [vmem:[%s329 + $0x38] sm:$0xf]
        %v346 = vld [vmem:[%s329 + $0x3c] sm:$0xf]
        %v347 = vld [vmem:[%s329 + $0x40] sm:$0xf]
        %v348 = vld [vmem:[%s329 + $0x44] sm:$0xf]
        %v349 = vld [vmem:[%s329 + $0x48] sm:$0xf]
        %v350 = vld [vmem:[%s329 + $0x4c] sm:$0xf]
        %v351 = vld [vmem:[%s329 + $0x50] sm:$0xf]
        %v352 = vld [vmem:[%s329 + $0x54] sm:$0xf]
        %v353 = vld [vmem:[%s329 + $0x58] sm:$0xf]
        %v354 = vld [vmem:[%s329 + $0x5c] sm:$0xf]
        %v355 = vld [vmem:[%s329 + $0x60] sm:$0xf]
        %v356 = vld [vmem:[%s329 + $0x64] sm:$0xf]
        %v357 = vld [vmem:[%s329 + $0x68] sm:$0xf]
        %v358 = vld [vmem:[%s329 + $0x6c] sm:$0xf]
        %v359 = vld [vmem:[%s329 + $0x70] sm:$0xf]
        %v360 = vld [vmem:[%s329 + $0x74] sm:$0xf]
        %v361 = vld [vmem:[%s329 + $0x78] sm:$0xf]
        %v362 = vld [vmem:[%s329 + $0x7c] sm:$0xf]
        %v363 = vunpack.c.l.bf16 %v331
        %v364 = vunpack.c.l.bf16 %v332
        %v365 = vunpack.c.l.bf16 %v333
        %v366 = vunpack.c.l.bf16 %v334
        %v367 = vunpack.c.l.bf16 %v335
        %v368 = vunpack.c.l.bf16 %v336
        %v369 = vunpack.c.l.bf16 %v337
        %v370 = vunpack.c.l.bf16 %v338
        %v371 = vunpack.c.l.bf16 %v339
        %v372 = vunpack.c.l.bf16 %v340
        %v373 = vunpack.c.l.bf16 %v341
        %v374 = vunpack.c.l.bf16 %v342
        %v375 = vunpack.c.l.bf16 %v343
        %v376 = vunpack.c.l.bf16 %v344
        %v377 = vunpack.c.l.bf16 %v345
        %v378 = vunpack.c.l.bf16 %v346
        %v379 = vunpack.c.l.bf16 %v347
        %v380 = vunpack.c.l.bf16 %v348
        %v381 = vunpack.c.l.bf16 %v349
        %v382 = vunpack.c.l.bf16 %v350
        %v383 = vunpack.c.l.bf16 %v351
        %v384 = vunpack.c.l.bf16 %v352
        %v385 = vunpack.c.l.bf16 %v353
        %v386 = vunpack.c.l.bf16 %v354
        %v387 = vunpack.c.l.bf16 %v355
        %v388 = vunpack.c.l.bf16 %v356
        %v389 = vunpack.c.l.bf16 %v357
        %v390 = vunpack.c.l.bf16 %v358
        %v391 = vunpack.c.l.bf16 %v359
        %v392 = vunpack.c.l.bf16 %v360
        %v393 = vunpack.c.l.bf16 %v361
        %v394 = vunpack.c.l.bf16 %v362
        %vm395 = vcmask 523264
        %396 = vst.msk [vmem:[#allocation2] sm:$0xff] %vm395, %v363
        %397 = vst.msk [vmem:[#allocation2 + $0x8] sm:$0xff] %vm395, %v364
        %398 = vst.msk [vmem:[#allocation2 + $0x10] sm:$0xff] %vm395, %v365
        %399 = vst.msk [vmem:[#allocation2 + $0x18] sm:$0xff] %vm395, %v366
        %400 = vst.msk [vmem:[#allocation2 + $0x20] sm:$0xff] %vm395, %v367
        %401 = vst.msk [vmem:[#allocation2 + $0x28] sm:$0xff] %vm395, %v368
        %402 = vst.msk [vmem:[#allocation2 + $0x30] sm:$0xff] %vm395, %v369
        %403 = vst.msk [vmem:[#allocation2 + $0x38] sm:$0xff] %vm395, %v370
        %404 = vst.msk [vmem:[#allocation2 + $0x40] sm:$0xff] %vm395, %v371
        %405 = vst.msk [vmem:[#allocation2 + $0x48] sm:$0xff] %vm395, %v372
        %406 = vst.msk [vmem:[#allocation2 + $0x50] sm:$0xff] %vm395, %v373
        %407 = vst.msk [vmem:[#allocation2 + $0x58] sm:$0xff] %vm395, %v374
        %408 = vst.msk [vmem:[#allocation2 + $0x60] sm:$0xff] %vm395, %v375
        %409 = vst.msk [vmem:[#allocation2 + $0x68] sm:$0xff] %vm395, %v376
        %410 = vst.msk [vmem:[#allocation2 + $0x70] sm:$0xff] %vm395, %v377
        %411 = vst.msk [vmem:[#allocation2 + $0x78] sm:$0xff] %vm395, %v378
        %412 = vst.msk [vmem:[#allocation2 + $0x80] sm:$0xff] %vm395, %v379
        %413 = vst.msk [vmem:[#allocation2 + $0x88] sm:$0xff] %vm395, %v380
        %414 = vst.msk [vmem:[#allocation2 + $0x90] sm:$0xff] %vm395, %v381
        %415 = vst.msk [vmem:[#allocation2 + $0x98] sm:$0xff] %vm395, %v382
        %416 = vst.msk [vmem:[#allocation2 + $0xa0] sm:$0xff] %vm395, %v383
        %417 = vst.msk [vmem:[#allocation2 + $0xa8] sm:$0xff] %vm395, %v384
        %418 = vst.msk [vmem:[#allocation2 + $0xb0] sm:$0xff] %vm395, %v385
        %419 = vst.msk [vmem:[#allocation2 + $0xb8] sm:$0xff] %vm395, %v386
        %420 = vst.msk [vmem:[#allocation2 + $0xc0] sm:$0xff] %vm395, %v387
        %421 = vst.msk [vmem:[#allocation2 + $0xc8] sm:$0xff] %vm395, %v388
        %422 = vst.msk [vmem:[#allocation2 + $0xd0] sm:$0xff] %vm395, %v389
        %423 = vst.msk [vmem:[#allocation2 + $0xd8] sm:$0xff] %vm395, %v390
        %424 = vst.msk [vmem:[#allocation2 + $0xe0] sm:$0xff] %vm395, %v391
        %425 = vst.msk [vmem:[#allocation2 + $0xe8] sm:$0xff] %vm395, %v392
        %426 = vst.msk [vmem:[#allocation2 + $0xf0] sm:$0xff] %vm395, %v393
        %427 = vst.msk [vmem:[#allocation2 + $0xf8] sm:$0xff] %vm395, %v394
        %v428 = vld [vmem:[#allocation2] ss:$7 sm:$0xff]
        %s429 = scalar_lea.vmem [#allocation2], 56
        %v430 = vld [vmem:[%s429] ss:$7 sm:$0xff]
        %s431 = scalar_lea.vmem [#allocation2], 112
        %v432 = vld [vmem:[%s431] ss:$7 sm:$0xff]
        %s433 = scalar_lea.vmem [#allocation2], 168
        %v434 = vld [vmem:[%s433] ss:$7 sm:$0xff]
        %s435 = scalar_lea.vmem [#allocation2], 224
        %v436 = vld [vmem:[%s435] ss:$7 sm:$0x7]
        %v437 = vpack.c.bf16 %v430, %v428
        %v438 = vpack.c.bf16 %v434, %v432
        %v439 = vpack.c.bf16 %v436, %v436
        %v440 = vld [vmem:[%s1] sm:$0xf]
        %v441 = vld [vmem:[%s1 + $0x4] sm:$0xf]
        %v442 = vld [vmem:[%s1 + $0x8] sm:$0xf]
        %v443 = vld [vmem:[%s1 + $0xc] sm:$0xf]
        %v444 = vld [vmem:[%s1 + $0x10] sm:$0xf]
        %v445 = vld [vmem:[%s1 + $0x14] sm:$0xf]
        %v446 = vld [vmem:[%s1 + $0x18] sm:$0xf]
        %v447 = vld [vmem:[%s1 + $0x1c] sm:$0xf]
        %s448 = scalar_lea.vmem [#allocation2], 1
        %v449 = vld [vmem:[%s448] ss:$7 sm:$0xff]
        %s450 = scalar_lea.vmem [#allocation2], 57
        %v451 = vld [vmem:[%s450] ss:$7 sm:$0xff]
        %s452 = scalar_lea.vmem [#allocation2], 113
        %v453 = vld [vmem:[%s452] ss:$7 sm:$0xff]
        %s454 = scalar_lea.vmem [#allocation2], 169
        %v455 = vld [vmem:[%s454] ss:$7 sm:$0xff]
        %s456 = scalar_lea.vmem [#allocation2], 225
        %v457 = vld [vmem:[%s456] ss:$7 sm:$0x7]
        %v458 = vpack.c.bf16 %v451, %v449
        %v459 = vpack.c.bf16 %v455, %v453
        %v460 = vpack.c.bf16 %v457, %v457
        %v461 = vld [vmem:[%s1 + $0x20] sm:$0xf]
        %v462 = vld [vmem:[%s1 + $0x24] sm:$0xf]
        %v463 = vld [vmem:[%s1 + $0x28] sm:$0xf]
        %v464 = vld [vmem:[%s1 + $0x2c] sm:$0xf]
        %v465 = vld [vmem:[%s1 + $0x30] sm:$0xf]
        %v466 = vld [vmem:[%s1 + $0x34] sm:$0xf]
        %v467 = vld [vmem:[%s1 + $0x38] sm:$0xf]
        %v468 = vld [vmem:[%s1 + $0x3c] sm:$0xf]
        %v477 = vunpack.c.l.b16 %v461
        %v478 = vunpack.c.l.b16 %v462
        %v479 = vunpack.c.l.b16 %v463
        %v480 = vunpack.c.l.b16 %v464
        %v481 = vunpack.c.l.b16 %v465
        %v482 = vunpack.c.l.b16 %v466
        %v483 = vunpack.c.l.b16 %v467
        %v484 = vunpack.c.l.b16 %v468
        %v485 = vpack.c.b16 %v478, %v477
        %v486 = vpack.c.b16 %v480, %v479
        %v487 = vpack.c.b16 %v482, %v481
        %v488 = vpack.c.b16 %v484, %v483
        %v494 = vsel %vm395, %v458, 0
        %v497 = vsel %vm395, %v459, 0
        %v500 = vsel %vm395, %v460, 0
        %502 = vmatpush.bf16.msra.mxu0 0
        %503 = vmatpush.bf16.msra.mxu0 0
        %504 = vmatpush.bf16.msra.mxu0 0
        %505 = vmatpush.bf16.msra.mxu0 0
        %506 = vmatpush.bf16.msra.mxu0 %v488
        %507 = vmatpush.bf16.msra.mxu0 %v487
        %508 = vmatpush.bf16.msra.mxu0 %v486
        %509 = vmatpush.bf16.msra.mxu0 %v485
        %510 = vmatmul.bf16.gmra.mxu0 %v494
        %v511 = vpop.f32.mrf.mxu0
        %v512 = vadd.f32 0.0, %v511
        %v513 = vpop.f32.mrf.mxu0
        %v514 = vadd.f32 0.0, %v513
        %515 = vmatmul.bf16.gmra.mxu0 %v497
        %v516 = vpop.f32.mrf.mxu0
        %v517 = vadd.f32 0.0, %v516
        %v518 = vpop.f32.mrf.mxu0
        %v519 = vadd.f32 0.0, %v518
        %520 = vmatmul.bf16.gmra.mxu0 %v500
        %v521 = vpop.f32.mrf.mxu0
        %v522 = vadd.f32 0.0, %v521
        %v523 = vpop.f32.mrf.mxu0
        %524 = vdwg.mxu0
        %v533 = vunpack.c.l.b16 %v440
        %v534 = vunpack.c.l.b16 %v441
        %v535 = vunpack.c.l.b16 %v442
        %v536 = vunpack.c.l.b16 %v443
        %v537 = vunpack.c.l.b16 %v444
        %v538 = vunpack.c.l.b16 %v445
        %v539 = vunpack.c.l.b16 %v446
        %v540 = vunpack.c.l.b16 %v447
        %v541 = vpack.c.b16 %v534, %v533
        %v542 = vpack.c.b16 %v536, %v535
        %v543 = vpack.c.b16 %v538, %v537
        %v544 = vpack.c.b16 %v540, %v539
        %v550 = vsel %vm395, %v437, 0
        %v553 = vsel %vm395, %v438, 0
        %v556 = vsel %vm395, %v439, 0
        %558 = vmatpush.bf16.msra.mxu0 0
        %559 = vmatpush.bf16.msra.mxu0 0
        %560 = vmatpush.bf16.msra.mxu0 0
        %561 = vmatpush.bf16.msra.mxu0 0
        %562 = vmatpush.bf16.msra.mxu0 %v544
        %563 = vmatpush.bf16.msra.mxu0 %v543
        %564 = vmatpush.bf16.msra.mxu0 %v542
        %565 = vmatpush.bf16.msra.mxu0 %v541
        %566 = vmatmul.bf16.gmra.mxu0 %v550
        %v567 = vpop.f32.mrf.mxu0
        %v568 = vadd.f32 %v512, %v567
        %v569 = vpop.f32.mrf.mxu0
        %v570 = vadd.f32 %v514, %v569
        %571 = vmatmul.bf16.gmra.mxu0 %v553
        %v572 = vpop.f32.mrf.mxu0
        %v573 = vadd.f32 %v517, %v572
        %v574 = vpop.f32.mrf.mxu0
        %v575 = vadd.f32 %v519, %v574
        %576 = vmatmul.bf16.gmra.mxu0 %v556
        %v577 = vpop.f32.mrf.mxu0
        %v578 = vadd.f32 %v522, %v577
        %v579 = vpop.f32.mrf.mxu0
        %580 = vdwg.mxu0
        %s581 = scalar_lea.vmem [#allocation2], 2
        %v582 = vld [vmem:[%s581] ss:$7 sm:$0xff]
        %s583 = scalar_lea.vmem [#allocation2], 58
        %v584 = vld [vmem:[%s583] ss:$7 sm:$0xff]
        %s585 = scalar_lea.vmem [#allocation2], 114
        %v586 = vld [vmem:[%s585] ss:$7 sm:$0xff]
        %s587 = scalar_lea.vmem [#allocation2], 170
        %v588 = vld [vmem:[%s587] ss:$7 sm:$0xff]
        %s589 = scalar_lea.vmem [#allocation2], 226
        %v590 = vld [vmem:[%s589] ss:$7 sm:$0x7]
        %v591 = vpack.c.bf16 %v584, %v582
        %v592 = vpack.c.bf16 %v588, %v586
        %v593 = vpack.c.bf16 %v590, %v590
        %v594 = vld [vmem:[%s1 + $0x40] sm:$0xf]
        %v595 = vld [vmem:[%s1 + $0x44] sm:$0xf]
        %v596 = vld [vmem:[%s1 + $0x48] sm:$0xf]
        %v597 = vld [vmem:[%s1 + $0x4c] sm:$0xf]
        %v598 = vld [vmem:[%s1 + $0x50] sm:$0xf]
        %v599 = vld [vmem:[%s1 + $0x54] sm:$0xf]
        %v600 = vld [vmem:[%s1 + $0x58] sm:$0xf]
        %v601 = vld [vmem:[%s1 + $0x5c] sm:$0xf]
        %v610 = vunpack.c.l.b16 %v594
        %v611 = vunpack.c.l.b16 %v595
        %v612 = vunpack.c.l.b16 %v596
        %v613 = vunpack.c.l.b16 %v597
        %v614 = vunpack.c.l.b16 %v598
        %v615 = vunpack.c.l.b16 %v599
        %v616 = vunpack.c.l.b16 %v600
        %v617 = vunpack.c.l.b16 %v601
        %v618 = vpack.c.b16 %v611, %v610
        %v619 = vpack.c.b16 %v613, %v612
        %v620 = vpack.c.b16 %v615, %v614
        %v621 = vpack.c.b16 %v617, %v616
        %v627 = vsel %vm395, %v591, 0
        %v630 = vsel %vm395, %v592, 0
        %v633 = vsel %vm395, %v593, 0
        %635 = vmatpush.bf16.msra.mxu0 0
        %636 = vmatpush.bf16.msra.mxu0 0
        %637 = vmatpush.bf16.msra.mxu0 0
        %638 = vmatpush.bf16.msra.mxu0 0
        %639 = vmatpush.bf16.msra.mxu0 %v621
        %640 = vmatpush.bf16.msra.mxu0 %v620
        %641 = vmatpush.bf16.msra.mxu0 %v619
        %642 = vmatpush.bf16.msra.mxu0 %v618
        %643 = vmatmul.bf16.gmra.mxu0 %v627
        %v644 = vpop.f32.mrf.mxu0
        %v645 = vadd.f32 0.0, %v644
        %v646 = vpop.f32.mrf.mxu0
        %v647 = vadd.f32 0.0, %v646
        %648 = vmatmul.bf16.gmra.mxu0 %v630
        %v649 = vpop.f32.mrf.mxu0
        %v650 = vadd.f32 0.0, %v649
        %v651 = vpop.f32.mrf.mxu0
        %v652 = vadd.f32 0.0, %v651
        %653 = vmatmul.bf16.gmra.mxu0 %v633
        %v654 = vpop.f32.mrf.mxu0
        %v655 = vadd.f32 0.0, %v654
        %v656 = vpop.f32.mrf.mxu0
        %657 = vdwg.mxu0
        %v658 = vadd.f32 %v568, %v645
        %v659 = vadd.f32 %v570, %v647
        %v660 = vadd.f32 %v573, %v650
        %v661 = vadd.f32 %v575, %v652
        %v662 = vadd.f32 %v578, %v655
        %s663 = scalar_lea.vmem [#allocation2], 3
        %v664 = vld [vmem:[%s663] ss:$7 sm:$0xff]
        %s665 = scalar_lea.vmem [#allocation2], 59
        %v666 = vld [vmem:[%s665] ss:$7 sm:$0xff]
        %s667 = scalar_lea.vmem [#allocation2], 115
        %v668 = vld [vmem:[%s667] ss:$7 sm:$0xff]
        %s669 = scalar_lea.vmem [#allocation2], 171
        %v670 = vld [vmem:[%s669] ss:$7 sm:$0xff]
        %s671 = scalar_lea.vmem [#allocation2], 227
        %v672 = vld [vmem:[%s671] ss:$7 sm:$0x7]
        %v673 = vpack.c.bf16 %v666, %v664
        %v674 = vpack.c.bf16 %v670, %v668
        %v675 = vpack.c.bf16 %v672, %v672
        %v676 = vld [vmem:[%s1 + $0x60] sm:$0xf]
        %v677 = vld [vmem:[%s1 + $0x64] sm:$0xf]
        %v678 = vld [vmem:[%s1 + $0x68] sm:$0xf]
        %v679 = vld [vmem:[%s1 + $0x6c] sm:$0xf]
        %v680 = vld [vmem:[%s1 + $0x70] sm:$0xf]
        %v681 = vld [vmem:[%s1 + $0x74] sm:$0xf]
        %v682 = vld [vmem:[%s1 + $0x78] sm:$0xf]
        %v683 = vld [vmem:[%s1 + $0x7c] sm:$0xf]
        %v692 = vunpack.c.l.b16 %v676
        %v693 = vunpack.c.l.b16 %v677
        %v694 = vunpack.c.l.b16 %v678
        %v695 = vunpack.c.l.b16 %v679
        %v696 = vunpack.c.l.b16 %v680
        %v697 = vunpack.c.l.b16 %v681
        %v698 = vunpack.c.l.b16 %v682
        %v699 = vunpack.c.l.b16 %v683
        %v700 = vpack.c.b16 %v693, %v692
        %v701 = vpack.c.b16 %v695, %v694
        %v702 = vpack.c.b16 %v697, %v696
        %v703 = vpack.c.b16 %v699, %v698
        %v709 = vsel %vm395, %v673, 0
        %v712 = vsel %vm395, %v674, 0
        %v715 = vsel %vm395, %v675, 0
        %717 = vmatpush.bf16.msra.mxu0 0
        %718 = vmatpush.bf16.msra.mxu0 0
        %719 = vmatpush.bf16.msra.mxu0 0
        %720 = vmatpush.bf16.msra.mxu0 0
        %721 = vmatpush.bf16.msra.mxu0 %v703
        %722 = vmatpush.bf16.msra.mxu0 %v702
        %723 = vmatpush.bf16.msra.mxu0 %v701
        %724 = vmatpush.bf16.msra.mxu0 %v700
        %725 = vmatmul.bf16.gmra.mxu0 %v709
        %v726 = vpop.f32.mrf.mxu0
        %v727 = vadd.f32 0.0, %v726
        %v728 = vpop.f32.mrf.mxu0
        %v729 = vadd.f32 0.0, %v728
        %730 = vmatmul.bf16.gmra.mxu0 %v712
        %v731 = vpop.f32.mrf.mxu0
        %v732 = vadd.f32 0.0, %v731
        %v733 = vpop.f32.mrf.mxu0
        %v734 = vadd.f32 0.0, %v733
        %735 = vmatmul.bf16.gmra.mxu0 %v715
        %v736 = vpop.f32.mrf.mxu0
        %v737 = vadd.f32 0.0, %v736
        %v738 = vpop.f32.mrf.mxu0
        %739 = vdwg.mxu0
        %v740 = vadd.f32 %v658, %v727
        %v741 = vadd.f32 %v659, %v729
        %v742 = vadd.f32 %v660, %v732
        %v743 = vadd.f32 %v661, %v734
        %v744 = vadd.f32 %v662, %v737
        %s745 = scalar_lea.vmem [#allocation2], 4
        %v746 = vld [vmem:[%s745] ss:$7 sm:$0xff]
        %s747 = scalar_lea.vmem [#allocation2], 60
        %v748 = vld [vmem:[%s747] ss:$7 sm:$0xff]
        %s749 = scalar_lea.vmem [#allocation2], 116
        %v750 = vld [vmem:[%s749] ss:$7 sm:$0xff]
        %s751 = scalar_lea.vmem [#allocation2], 172
        %v752 = vld [vmem:[%s751] ss:$7 sm:$0xff]
        %s753 = scalar_lea.vmem [#allocation2], 228
        %v754 = vld [vmem:[%s753] ss:$7 sm:$0x7]
        %v755 = vpack.c.bf16 %v748, %v746
        %v756 = vpack.c.bf16 %v752, %v750
        %v757 = vpack.c.bf16 %v754, %v754
        %v758 = vld [vmem:[%s1 + $0x80] sm:$0xf]
        %v759 = vld [vmem:[%s1 + $0x84] sm:$0xf]
        %v760 = vld [vmem:[%s1 + $0x88] sm:$0xf]
        %v761 = vld [vmem:[%s1 + $0x8c] sm:$0xf]
        %v762 = vld [vmem:[%s1 + $0x90] sm:$0xf]
        %v763 = vld [vmem:[%s1 + $0x94] sm:$0xf]
        %v764 = vld [vmem:[%s1 + $0x98] sm:$0xf]
        %v765 = vld [vmem:[%s1 + $0x9c] sm:$0xf]
        %v774 = vunpack.c.l.b16 %v758
        %v775 = vunpack.c.l.b16 %v759
        %v776 = vunpack.c.l.b16 %v760
        %v777 = vunpack.c.l.b16 %v761
        %v778 = vunpack.c.l.b16 %v762
        %v779 = vunpack.c.l.b16 %v763
        %v780 = vunpack.c.l.b16 %v764
        %v781 = vunpack.c.l.b16 %v765
        %v782 = vpack.c.b16 %v775, %v774
        %v783 = vpack.c.b16 %v777, %v776
        %v784 = vpack.c.b16 %v779, %v778
        %v785 = vpack.c.b16 %v781, %v780
        %v791 = vsel %vm395, %v755, 0
        %v794 = vsel %vm395, %v756, 0
        %v797 = vsel %vm395, %v757, 0
        %799 = vmatpush.bf16.msra.mxu0 0
        %800 = vmatpush.bf16.msra.mxu0 0
        %801 = vmatpush.bf16.msra.mxu0 0
        %802 = vmatpush.bf16.msra.mxu0 0
        %803 = vmatpush.bf16.msra.mxu0 %v785
        %804 = vmatpush.bf16.msra.mxu0 %v784
        %805 = vmatpush.bf16.msra.mxu0 %v783
        %806 = vmatpush.bf16.msra.mxu0 %v782
        %807 = vmatmul.bf16.gmra.mxu0 %v791
        %v808 = vpop.f32.mrf.mxu0
        %v809 = vadd.f32 0.0, %v808
        %v810 = vpop.f32.mrf.mxu0
        %v811 = vadd.f32 0.0, %v810
        %812 = vmatmul.bf16.gmra.mxu0 %v794
        %v813 = vpop.f32.mrf.mxu0
        %v814 = vadd.f32 0.0, %v813
        %v815 = vpop.f32.mrf.mxu0
        %v816 = vadd.f32 0.0, %v815
        %817 = vmatmul.bf16.gmra.mxu0 %v797
        %v818 = vpop.f32.mrf.mxu0
        %v819 = vadd.f32 0.0, %v818
        %v820 = vpop.f32.mrf.mxu0
        %821 = vdwg.mxu0
        %v822 = vadd.f32 %v740, %v809
        %v823 = vadd.f32 %v741, %v811
        %v824 = vadd.f32 %v742, %v814
        %v825 = vadd.f32 %v743, %v816
        %v826 = vadd.f32 %v744, %v819
        %s827 = scalar_lea.vmem [#allocation2], 5
        %v828 = vld [vmem:[%s827] ss:$7 sm:$0xff]
        %s829 = scalar_lea.vmem [#allocation2], 61
        %v830 = vld [vmem:[%s829] ss:$7 sm:$0xff]
        %s831 = scalar_lea.vmem [#allocation2], 117
        %v832 = vld [vmem:[%s831] ss:$7 sm:$0xff]
        %s833 = scalar_lea.vmem [#allocation2], 173
        %v834 = vld [vmem:[%s833] ss:$7 sm:$0xff]
        %s835 = scalar_lea.vmem [#allocation2], 229
        %v836 = vld [vmem:[%s835] ss:$7 sm:$0x7]
        %v837 = vpack.c.bf16 %v830, %v828
        %v838 = vpack.c.bf16 %v834, %v832
        %v839 = vpack.c.bf16 %v836, %v836
        %v840 = vld [vmem:[%s1 + $0xa0] sm:$0xf]
        %v841 = vld [vmem:[%s1 + $0xa4] sm:$0xf]
        %v842 = vld [vmem:[%s1 + $0xa8] sm:$0xf]
        %v843 = vld [vmem:[%s1 + $0xac] sm:$0xf]
        %v844 = vld [vmem:[%s1 + $0xb0] sm:$0xf]
        %v845 = vld [vmem:[%s1 + $0xb4] sm:$0xf]
        %v846 = vld [vmem:[%s1 + $0xb8] sm:$0xf]
        %v847 = vld [vmem:[%s1 + $0xbc] sm:$0xf]
        %v856 = vunpack.c.l.b16 %v840
        %v857 = vunpack.c.l.b16 %v841
        %v858 = vunpack.c.l.b16 %v842
        %v859 = vunpack.c.l.b16 %v843
        %v860 = vunpack.c.l.b16 %v844
        %v861 = vunpack.c.l.b16 %v845
        %v862 = vunpack.c.l.b16 %v846
        %v863 = vunpack.c.l.b16 %v847
        %v864 = vpack.c.b16 %v857, %v856
        %v865 = vpack.c.b16 %v859, %v858
        %v866 = vpack.c.b16 %v861, %v860
        %v867 = vpack.c.b16 %v863, %v862
        %v873 = vsel %vm395, %v837, 0
        %v876 = vsel %vm395, %v838, 0
        %v879 = vsel %vm395, %v839, 0
        %881 = vmatpush.bf16.msra.mxu0 0
        %882 = vmatpush.bf16.msra.mxu0 0
        %883 = vmatpush.bf16.msra.mxu0 0
        %884 = vmatpush.bf16.msra.mxu0 0
        %885 = vmatpush.bf16.msra.mxu0 %v867
        %886 = vmatpush.bf16.msra.mxu0 %v866
        %887 = vmatpush.bf16.msra.mxu0 %v865
        %888 = vmatpush.bf16.msra.mxu0 %v864
        %889 = vmatmul.bf16.gmra.mxu0 %v873
        %v890 = vpop.f32.mrf.mxu0
        %v891 = vadd.f32 0.0, %v890
        %v892 = vpop.f32.mrf.mxu0
        %v893 = vadd.f32 0.0, %v892
        %894 = vmatmul.bf16.gmra.mxu0 %v876
        %v895 = vpop.f32.mrf.mxu0
        %v896 = vadd.f32 0.0, %v895
        %v897 = vpop.f32.mrf.mxu0
        %v898 = vadd.f32 0.0, %v897
        %899 = vmatmul.bf16.gmra.mxu0 %v879
        %v900 = vpop.f32.mrf.mxu0
        %v901 = vadd.f32 0.0, %v900
        %v902 = vpop.f32.mrf.mxu0
        %903 = vdwg.mxu0
        %v904 = vadd.f32 %v822, %v891
        %v905 = vadd.f32 %v823, %v893
        %v906 = vadd.f32 %v824, %v896
        %v907 = vadd.f32 %v825, %v898
        %v908 = vadd.f32 %v826, %v901
        %s909 = scalar_lea.vmem [#allocation2], 6
        %v910 = vld [vmem:[%s909] ss:$7 sm:$0xff]
        %s911 = scalar_lea.vmem [#allocation2], 62
        %v912 = vld [vmem:[%s911] ss:$7 sm:$0xff]
        %s913 = scalar_lea.vmem [#allocation2], 118
        %v914 = vld [vmem:[%s913] ss:$7 sm:$0xff]
        %s915 = scalar_lea.vmem [#allocation2], 174
        %v916 = vld [vmem:[%s915] ss:$7 sm:$0xff]
        %s917 = scalar_lea.vmem [#allocation2], 230
        %v918 = vld [vmem:[%s917] ss:$7 sm:$0x7]
        %v919 = vpack.c.bf16 %v912, %v910
        %v920 = vpack.c.bf16 %v916, %v914
        %v921 = vpack.c.bf16 %v918, %v918
        %v922 = vld [vmem:[%s1 + $0xc0] sm:$0xf]
        %v923 = vld [vmem:[%s1 + $0xc4] sm:$0xf]
        %v924 = vld [vmem:[%s1 + $0xc8] sm:$0xf]
        %v925 = vld [vmem:[%s1 + $0xcc] sm:$0xf]
        %v926 = vld [vmem:[%s1 + $0xd0] sm:$0xf]
        %v927 = vld [vmem:[%s1 + $0xd4] sm:$0xf]
        %v928 = vld [vmem:[%s1 + $0xd8] sm:$0xf]
        %v929 = vld [vmem:[%s1 + $0xdc] sm:$0xf]
        %v938 = vunpack.c.l.b16 %v922
        %v939 = vunpack.c.l.b16 %v923
        %v940 = vunpack.c.l.b16 %v924
        %v941 = vunpack.c.l.b16 %v925
        %v942 = vunpack.c.l.b16 %v926
        %v943 = vunpack.c.l.b16 %v927
        %v944 = vunpack.c.l.b16 %v928
        %v945 = vunpack.c.l.b16 %v929
        %v946 = vpack.c.b16 %v939, %v938
        %v947 = vpack.c.b16 %v941, %v940
        %v948 = vpack.c.b16 %v943, %v942
        %v949 = vpack.c.b16 %v945, %v944
        %v955 = vsel %vm395, %v919, 0
        %v958 = vsel %vm395, %v920, 0
        %v961 = vsel %vm395, %v921, 0
        %963 = vmatpush.bf16.msra.mxu0 0
        %964 = vmatpush.bf16.msra.mxu0 0
        %965 = vmatpush.bf16.msra.mxu0 0
        %966 = vmatpush.bf16.msra.mxu0 0
        %967 = vmatpush.bf16.msra.mxu0 %v949
        %968 = vmatpush.bf16.msra.mxu0 %v948
        %969 = vmatpush.bf16.msra.mxu0 %v947
        %970 = vmatpush.bf16.msra.mxu0 %v946
        %971 = vmatmul.bf16.gmra.mxu0 %v955
        %v972 = vpop.f32.mrf.mxu0
        %v973 = vadd.f32 0.0, %v972
        %v974 = vpop.f32.mrf.mxu0
        %v975 = vadd.f32 0.0, %v974
        %976 = vmatmul.bf16.gmra.mxu0 %v958
        %v977 = vpop.f32.mrf.mxu0
        %v978 = vadd.f32 0.0, %v977
        %v979 = vpop.f32.mrf.mxu0
        %v980 = vadd.f32 0.0, %v979
        %981 = vmatmul.bf16.gmra.mxu0 %v961
        %v982 = vpop.f32.mrf.mxu0
        %v983 = vadd.f32 0.0, %v982
        %v984 = vpop.f32.mrf.mxu0
        %985 = vdwg.mxu0
        %v986 = vadd.f32 %v904, %v973
        %v987 = vadd.f32 %v905, %v975
        %v988 = vadd.f32 %v906, %v978
        %v989 = vadd.f32 %v907, %v980
        %v990 = vadd.f32 %v908, %v983
        %s991 = scalar_lea.vmem [#allocation2], 7
        %v992 = vld [vmem:[%s991] ss:$7 sm:$0xff]
        %s993 = scalar_lea.vmem [#allocation2], 63
        %v994 = vld [vmem:[%s993] ss:$7 sm:$0xff]
        %s995 = scalar_lea.vmem [#allocation2], 119
        %v996 = vld [vmem:[%s995] ss:$7 sm:$0xff]
        %s997 = scalar_lea.vmem [#allocation2], 175
        %v998 = vld [vmem:[%s997] ss:$7 sm:$0xff]
        %s999 = scalar_lea.vmem [#allocation2], 231
        %v1000 = vld [vmem:[%s999] ss:$7 sm:$0x7]
        %v1001 = vpack.c.bf16 %v994, %v992
        %v1002 = vpack.c.bf16 %v998, %v996
        %v1003 = vpack.c.bf16 %v1000, %v1000
        %v1004 = vld [vmem:[%s1 + $0xe0] sm:$0xf]
        %v1005 = vld [vmem:[%s1 + $0xe4] sm:$0xf]
        %v1006 = vld [vmem:[%s1 + $0xe8] sm:$0xf]
        %v1007 = vld [vmem:[%s1 + $0xec] sm:$0xf]
        %v1008 = vld [vmem:[%s1 + $0xf0] sm:$0xf]
        %v1009 = vld [vmem:[%s1 + $0xf4] sm:$0xf]
        %v1010 = vld [vmem:[%s1 + $0xf8] sm:$0xf]
        %v1011 = vld [vmem:[%s1 + $0xfc] sm:$0xf]
        %v1020 = vunpack.c.l.b16 %v1004
        %v1021 = vunpack.c.l.b16 %v1005
        %v1022 = vunpack.c.l.b16 %v1006
        %v1023 = vunpack.c.l.b16 %v1007
        %v1024 = vunpack.c.l.b16 %v1008
        %v1025 = vunpack.c.l.b16 %v1009
        %v1026 = vunpack.c.l.b16 %v1010
        %v1027 = vunpack.c.l.b16 %v1011
        %v1028 = vpack.c.b16 %v1021, %v1020
        %v1029 = vpack.c.b16 %v1023, %v1022
        %v1030 = vpack.c.b16 %v1025, %v1024
        %v1031 = vpack.c.b16 %v1027, %v1026
        %v1037 = vsel %vm395, %v1001, 0
        %v1040 = vsel %vm395, %v1002, 0
        %v1043 = vsel %vm395, %v1003, 0
        %1045 = vmatpush.bf16.msra.mxu0 0
        %1046 = vmatpush.bf16.msra.mxu0 0
        %1047 = vmatpush.bf16.msra.mxu0 0
        %1048 = vmatpush.bf16.msra.mxu0 0
        %1049 = vmatpush.bf16.msra.mxu0 %v1031
        %1050 = vmatpush.bf16.msra.mxu0 %v1030
        %1051 = vmatpush.bf16.msra.mxu0 %v1029
        %1052 = vmatpush.bf16.msra.mxu0 %v1028
        %1053 = vmatmul.bf16.gmra.mxu0 %v1037
        %v1054 = vpop.f32.mrf.mxu0
        %v1055 = vadd.f32 0.0, %v1054
        %v1056 = vpop.f32.mrf.mxu0
        %v1057 = vadd.f32 0.0, %v1056
        %1058 = vmatmul.bf16.gmra.mxu0 %v1040
        %v1059 = vpop.f32.mrf.mxu0
        %v1060 = vadd.f32 0.0, %v1059
        %v1061 = vpop.f32.mrf.mxu0
        %v1062 = vadd.f32 0.0, %v1061
        %1063 = vmatmul.bf16.gmra.mxu0 %v1043
        %v1064 = vpop.f32.mrf.mxu0
        %v1065 = vadd.f32 0.0, %v1064
        %v1066 = vpop.f32.mrf.mxu0
        %1067 = vdwg.mxu0
        %v1068 = vadd.f32 %v986, %v1055
        %v1069 = vadd.f32 %v987, %v1057
        %v1070 = vadd.f32 %v988, %v1060
        %v1071 = vadd.f32 %v989, %v1062
        %v1072 = vadd.f32 %v990, %v1065
        %s1073 = scalar_lea.vmem [#allocation2], 8
        %v1074 = vld [vmem:[%s1073] ss:$7 sm:$0xff]
        %s1075 = scalar_lea.vmem [#allocation2], 64
        %v1076 = vld [vmem:[%s1075] ss:$7 sm:$0xff]
        %s1077 = scalar_lea.vmem [#allocation2], 120
        %v1078 = vld [vmem:[%s1077] ss:$7 sm:$0xff]
        %s1079 = scalar_lea.vmem [#allocation2], 176
        %v1080 = vld [vmem:[%s1079] ss:$7 sm:$0xff]
        %s1081 = scalar_lea.vmem [#allocation2], 232
        %v1082 = vld [vmem:[%s1081] ss:$7 sm:$0x7]
        %v1083 = vpack.c.bf16 %v1076, %v1074
        %v1084 = vpack.c.bf16 %v1080, %v1078
        %v1085 = vpack.c.bf16 %v1082, %v1082
        %v1086 = vld [vmem:[%s1 + $0x100] sm:$0xf]
        %v1087 = vld [vmem:[%s1 + $0x104] sm:$0xf]
        %v1088 = vld [vmem:[%s1 + $0x108] sm:$0xf]
        %v1089 = vld [vmem:[%s1 + $0x10c] sm:$0xf]
        %v1090 = vld [vmem:[%s1 + $0x110] sm:$0xf]
        %v1091 = vld [vmem:[%s1 + $0x114] sm:$0xf]
        %v1092 = vld [vmem:[%s1 + $0x118] sm:$0xf]
        %v1093 = vld [vmem:[%s1 + $0x11c] sm:$0xf]
        %v1102 = vunpack.c.l.b16 %v1086
        %v1103 = vunpack.c.l.b16 %v1087
        %v1104 = vunpack.c.l.b16 %v1088
        %v1105 = vunpack.c.l.b16 %v1089
        %v1106 = vunpack.c.l.b16 %v1090
        %v1107 = vunpack.c.l.b16 %v1091
        %v1108 = vunpack.c.l.b16 %v1092
        %v1109 = vunpack.c.l.b16 %v1093
        %v1110 = vpack.c.b16 %v1103, %v1102
        %v1111 = vpack.c.b16 %v1105, %v1104
        %v1112 = vpack.c.b16 %v1107, %v1106
        %v1113 = vpack.c.b16 %v1109, %v1108
        %v1119 = vsel %vm395, %v1083, 0
        %v1122 = vsel %vm395, %v1084, 0
        %v1125 = vsel %vm395, %v1085, 0
        %1127 = vmatpush.bf16.msra.mxu0 0
        %1128 = vmatpush.bf16.msra.mxu0 0
        %1129 = vmatpush.bf16.msra.mxu0 0
        %1130 = vmatpush.bf16.msra.mxu0 0
        %1131 = vmatpush.bf16.msra.mxu0 %v1113
        %1132 = vmatpush.bf16.msra.mxu0 %v1112
        %1133 = vmatpush.bf16.msra.mxu0 %v1111
        %1134 = vmatpush.bf16.msra.mxu0 %v1110
        %1135 = vmatmul.bf16.gmra.mxu0 %v1119
        %v1136 = vpop.f32.mrf.mxu0
        %v1137 = vadd.f32 0.0, %v1136
        %v1138 = vpop.f32.mrf.mxu0
        %v1139 = vadd.f32 0.0, %v1138
        %1140 = vmatmul.bf16.gmra.mxu0 %v1122
        %v1141 = vpop.f32.mrf.mxu0
        %v1142 = vadd.f32 0.0, %v1141
        %v1143 = vpop.f32.mrf.mxu0
        %v1144 = vadd.f32 0.0, %v1143
        %1145 = vmatmul.bf16.gmra.mxu0 %v1125
        %v1146 = vpop.f32.mrf.mxu0
        %v1147 = vadd.f32 0.0, %v1146
        %v1148 = vpop.f32.mrf.mxu0
        %1149 = vdwg.mxu0
        %v1150 = vadd.f32 %v1068, %v1137
        %v1151 = vadd.f32 %v1069, %v1139
        %v1152 = vadd.f32 %v1070, %v1142
        %v1153 = vadd.f32 %v1071, %v1144
        %v1154 = vadd.f32 %v1072, %v1147
        %s1155 = scalar_lea.vmem [#allocation2], 9
        %v1156 = vld [vmem:[%s1155] ss:$7 sm:$0xff]
        %s1157 = scalar_lea.vmem [#allocation2], 65
        %v1158 = vld [vmem:[%s1157] ss:$7 sm:$0xff]
        %s1159 = scalar_lea.vmem [#allocation2], 121
        %v1160 = vld [vmem:[%s1159] ss:$7 sm:$0xff]
        %s1161 = scalar_lea.vmem [#allocation2], 177
        %v1162 = vld [vmem:[%s1161] ss:$7 sm:$0xff]
        %s1163 = scalar_lea.vmem [#allocation2], 233
        %v1164 = vld [vmem:[%s1163] ss:$7 sm:$0x7]
        %v1165 = vpack.c.bf16 %v1158, %v1156
        %v1166 = vpack.c.bf16 %v1162, %v1160
        %v1167 = vpack.c.bf16 %v1164, %v1164
        %v1168 = vld [vmem:[%s1 + $0x120] sm:$0xf]
        %v1169 = vld [vmem:[%s1 + $0x124] sm:$0xf]
        %v1170 = vld [vmem:[%s1 + $0x128] sm:$0xf]
        %v1171 = vld [vmem:[%s1 + $0x12c] sm:$0xf]
        %v1172 = vld [vmem:[%s1 + $0x130] sm:$0xf]
        %v1173 = vld [vmem:[%s1 + $0x134] sm:$0xf]
        %v1174 = vld [vmem:[%s1 + $0x138] sm:$0xf]
        %v1175 = vld [vmem:[%s1 + $0x13c] sm:$0xf]
        %v1184 = vunpack.c.l.b16 %v1168
        %v1185 = vunpack.c.l.b16 %v1169
        %v1186 = vunpack.c.l.b16 %v1170
        %v1187 = vunpack.c.l.b16 %v1171
        %v1188 = vunpack.c.l.b16 %v1172
        %v1189 = vunpack.c.l.b16 %v1173
        %v1190 = vunpack.c.l.b16 %v1174
        %v1191 = vunpack.c.l.b16 %v1175
        %v1192 = vpack.c.b16 %v1185, %v1184
        %v1193 = vpack.c.b16 %v1187, %v1186
        %v1194 = vpack.c.b16 %v1189, %v1188
        %v1195 = vpack.c.b16 %v1191, %v1190
        %v1201 = vsel %vm395, %v1165, 0
        %v1204 = vsel %vm395, %v1166, 0
        %v1207 = vsel %vm395, %v1167, 0
        %1209 = vmatpush.bf16.msra.mxu0 0
        %1210 = vmatpush.bf16.msra.mxu0 0
        %1211 = vmatpush.bf16.msra.mxu0 0
        %1212 = vmatpush.bf16.msra.mxu0 0
        %1213 = vmatpush.bf16.msra.mxu0 %v1195
        %1214 = vmatpush.bf16.msra.mxu0 %v1194
        %1215 = vmatpush.bf16.msra.mxu0 %v1193
        %1216 = vmatpush.bf16.msra.mxu0 %v1192
        %1217 = vmatmul.bf16.gmra.mxu0 %v1201
        %v1218 = vpop.f32.mrf.mxu0
        %v1219 = vadd.f32 0.0, %v1218
        %v1220 = vpop.f32.mrf.mxu0
        %v1221 = vadd.f32 0.0, %v1220
        %1222 = vmatmul.bf16.gmra.mxu0 %v1204
        %v1223 = vpop.f32.mrf.mxu0
        %v1224 = vadd.f32 0.0, %v1223
        %v1225 = vpop.f32.mrf.mxu0
        %v1226 = vadd.f32 0.0, %v1225
        %1227 = vmatmul.bf16.gmra.mxu0 %v1207
        %v1228 = vpop.f32.mrf.mxu0
        %v1229 = vadd.f32 0.0, %v1228
        %v1230 = vpop.f32.mrf.mxu0
        %1231 = vdwg.mxu0
        %v1232 = vadd.f32 %v1150, %v1219
        %v1233 = vadd.f32 %v1151, %v1221
        %v1234 = vadd.f32 %v1152, %v1224
        %v1235 = vadd.f32 %v1153, %v1226
        %v1236 = vadd.f32 %v1154, %v1229
        %s1237 = scalar_lea.vmem [#allocation2], 10
        %v1238 = vld [vmem:[%s1237] ss:$7 sm:$0xff]
        %s1239 = scalar_lea.vmem [#allocation2], 66
        %v1240 = vld [vmem:[%s1239] ss:$7 sm:$0xff]
        %s1241 = scalar_lea.vmem [#allocation2], 122
        %v1242 = vld [vmem:[%s1241] ss:$7 sm:$0xff]
        %s1243 = scalar_lea.vmem [#allocation2], 178
        %v1244 = vld [vmem:[%s1243] ss:$7 sm:$0xff]
        %s1245 = scalar_lea.vmem [#allocation2], 234
        %v1246 = vld [vmem:[%s1245] ss:$7 sm:$0x7]
        %v1247 = vpack.c.bf16 %v1240, %v1238
        %v1248 = vpack.c.bf16 %v1244, %v1242
        %v1249 = vpack.c.bf16 %v1246, %v1246
        %v1250 = vld [vmem:[%s1 + $0x140] sm:$0xf]
        %v1251 = vld [vmem:[%s1 + $0x144] sm:$0xf]
        %v1252 = vld [vmem:[%s1 + $0x148] sm:$0xf]
        %v1253 = vld [vmem:[%s1 + $0x14c] sm:$0xf]
        %v1254 = vld [vmem:[%s1 + $0x150] sm:$0xf]
        %v1255 = vld [vmem:[%s1 + $0x154] sm:$0xf]
        %v1256 = vld [vmem:[%s1 + $0x158] sm:$0xf]
        %v1257 = vld [vmem:[%s1 + $0x15c] sm:$0xf]
        %v1266 = vunpack.c.l.b16 %v1250
        %v1267 = vunpack.c.l.b16 %v1251
        %v1268 = vunpack.c.l.b16 %v1252
        %v1269 = vunpack.c.l.b16 %v1253
        %v1270 = vunpack.c.l.b16 %v1254
        %v1271 = vunpack.c.l.b16 %v1255
        %v1272 = vunpack.c.l.b16 %v1256
        %v1273 = vunpack.c.l.b16 %v1257
        %v1274 = vpack.c.b16 %v1267, %v1266
        %v1275 = vpack.c.b16 %v1269, %v1268
        %v1276 = vpack.c.b16 %v1271, %v1270
        %v1277 = vpack.c.b16 %v1273, %v1272
        %v1283 = vsel %vm395, %v1247, 0
        %v1286 = vsel %vm395, %v1248, 0
        %v1289 = vsel %vm395, %v1249, 0
        %1291 = vmatpush.bf16.msra.mxu0 0
        %1292 = vmatpush.bf16.msra.mxu0 0
        %1293 = vmatpush.bf16.msra.mxu0 0
        %1294 = vmatpush.bf16.msra.mxu0 0
        %1295 = vmatpush.bf16.msra.mxu0 %v1277
        %1296 = vmatpush.bf16.msra.mxu0 %v1276
        %1297 = vmatpush.bf16.msra.mxu0 %v1275
        %1298 = vmatpush.bf16.msra.mxu0 %v1274
        %1299 = vmatmul.bf16.gmra.mxu0 %v1283
        %v1300 = vpop.f32.mrf.mxu0
        %v1301 = vadd.f32 0.0, %v1300
        %v1302 = vpop.f32.mrf.mxu0
        %v1303 = vadd.f32 0.0, %v1302
        %1304 = vmatmul.bf16.gmra.mxu0 %v1286
        %v1305 = vpop.f32.mrf.mxu0
        %v1306 = vadd.f32 0.0, %v1305
        %v1307 = vpop.f32.mrf.mxu0
        %v1308 = vadd.f32 0.0, %v1307
        %1309 = vmatmul.bf16.gmra.mxu0 %v1289
        %v1310 = vpop.f32.mrf.mxu0
        %v1311 = vadd.f32 0.0, %v1310
        %v1312 = vpop.f32.mrf.mxu0
        %1313 = vdwg.mxu0
        %v1314 = vadd.f32 %v1232, %v1301
        %v1315 = vadd.f32 %v1233, %v1303
        %v1316 = vadd.f32 %v1234, %v1306
        %v1317 = vadd.f32 %v1235, %v1308
        %v1318 = vadd.f32 %v1236, %v1311
        %s1319 = scalar_lea.vmem [#allocation2], 11
        %v1320 = vld [vmem:[%s1319] ss:$7 sm:$0xff]
        %s1321 = scalar_lea.vmem [#allocation2], 67
        %v1322 = vld [vmem:[%s1321] ss:$7 sm:$0xff]
        %s1323 = scalar_lea.vmem [#allocation2], 123
        %v1324 = vld [vmem:[%s1323] ss:$7 sm:$0xff]
        %s1325 = scalar_lea.vmem [#allocation2], 179
        %v1326 = vld [vmem:[%s1325] ss:$7 sm:$0xff]
        %s1327 = scalar_lea.vmem [#allocation2], 235
        %v1328 = vld [vmem:[%s1327] ss:$7 sm:$0x7]
        %v1329 = vpack.c.bf16 %v1322, %v1320
        %v1330 = vpack.c.bf16 %v1326, %v1324
        %v1331 = vpack.c.bf16 %v1328, %v1328
        %v1332 = vld [vmem:[%s1 + $0x160] sm:$0xf]
        %v1333 = vld [vmem:[%s1 + $0x164] sm:$0xf]
        %v1334 = vld [vmem:[%s1 + $0x168] sm:$0xf]
        %v1335 = vld [vmem:[%s1 + $0x16c] sm:$0xf]
        %v1336 = vld [vmem:[%s1 + $0x170] sm:$0xf]
        %v1337 = vld [vmem:[%s1 + $0x174] sm:$0xf]
        %v1338 = vld [vmem:[%s1 + $0x178] sm:$0xf]
        %v1339 = vld [vmem:[%s1 + $0x17c] sm:$0xf]
        %v1348 = vunpack.c.l.b16 %v1332
        %v1349 = vunpack.c.l.b16 %v1333
        %v1350 = vunpack.c.l.b16 %v1334
        %v1351 = vunpack.c.l.b16 %v1335
        %v1352 = vunpack.c.l.b16 %v1336
        %v1353 = vunpack.c.l.b16 %v1337
        %v1354 = vunpack.c.l.b16 %v1338
        %v1355 = vunpack.c.l.b16 %v1339
        %v1356 = vpack.c.b16 %v1349, %v1348
        %v1357 = vpack.c.b16 %v1351, %v1350
        %v1358 = vpack.c.b16 %v1353, %v1352
        %v1359 = vpack.c.b16 %v1355, %v1354
        %v1365 = vsel %vm395, %v1329, 0
        %v1368 = vsel %vm395, %v1330, 0
        %v1371 = vsel %vm395, %v1331, 0
        %1373 = vmatpush.bf16.msra.mxu0 0
        %1374 = vmatpush.bf16.msra.mxu0 0
        %1375 = vmatpush.bf16.msra.mxu0 0
        %1376 = vmatpush.bf16.msra.mxu0 0
        %1377 = vmatpush.bf16.msra.mxu0 %v1359
        %1378 = vmatpush.bf16.msra.mxu0 %v1358
        %1379 = vmatpush.bf16.msra.mxu0 %v1357
        %1380 = vmatpush.bf16.msra.mxu0 %v1356
        %1381 = vmatmul.bf16.gmra.mxu0 %v1365
        %v1382 = vpop.f32.mrf.mxu0
        %v1383 = vadd.f32 0.0, %v1382
        %v1384 = vpop.f32.mrf.mxu0
        %v1385 = vadd.f32 0.0, %v1384
        %1386 = vmatmul.bf16.gmra.mxu0 %v1368
        %v1387 = vpop.f32.mrf.mxu0
        %v1388 = vadd.f32 0.0, %v1387
        %v1389 = vpop.f32.mrf.mxu0
        %v1390 = vadd.f32 0.0, %v1389
        %1391 = vmatmul.bf16.gmra.mxu0 %v1371
        %v1392 = vpop.f32.mrf.mxu0
        %v1393 = vadd.f32 0.0, %v1392
        %v1394 = vpop.f32.mrf.mxu0
        %1395 = vdwg.mxu0
        %v1396 = vadd.f32 %v1314, %v1383
        %v1397 = vadd.f32 %v1315, %v1385
        %v1398 = vadd.f32 %v1316, %v1388
        %v1399 = vadd.f32 %v1317, %v1390
        %v1400 = vadd.f32 %v1318, %v1393
        %s1401 = scalar_lea.vmem [#allocation2], 12
        %v1402 = vld [vmem:[%s1401] ss:$7 sm:$0xff]
        %s1403 = scalar_lea.vmem [#allocation2], 68
        %v1404 = vld [vmem:[%s1403] ss:$7 sm:$0xff]
        %s1405 = scalar_lea.vmem [#allocation2], 124
        %v1406 = vld [vmem:[%s1405] ss:$7 sm:$0xff]
        %s1407 = scalar_lea.vmem [#allocation2], 180
        %v1408 = vld [vmem:[%s1407] ss:$7 sm:$0xff]
        %s1409 = scalar_lea.vmem [#allocation2], 236
        %v1410 = vld [vmem:[%s1409] ss:$7 sm:$0x7]
        %v1411 = vpack.c.bf16 %v1404, %v1402
        %v1412 = vpack.c.bf16 %v1408, %v1406
        %v1413 = vpack.c.bf16 %v1410, %v1410
        %v1414 = vld [vmem:[%s1 + $0x180] sm:$0xf]
        %v1415 = vld [vmem:[%s1 + $0x184] sm:$0xf]
        %v1416 = vld [vmem:[%s1 + $0x188] sm:$0xf]
        %v1417 = vld [vmem:[%s1 + $0x18c] sm:$0xf]
        %v1418 = vld [vmem:[%s1 + $0x190] sm:$0xf]
        %v1419 = vld [vmem:[%s1 + $0x194] sm:$0xf]
        %v1420 = vld [vmem:[%s1 + $0x198] sm:$0xf]
        %v1421 = vld [vmem:[%s1 + $0x19c] sm:$0xf]
        %v1430 = vunpack.c.l.b16 %v1414
        %v1431 = vunpack.c.l.b16 %v1415
        %v1432 = vunpack.c.l.b16 %v1416
        %v1433 = vunpack.c.l.b16 %v1417
        %v1434 = vunpack.c.l.b16 %v1418
        %v1435 = vunpack.c.l.b16 %v1419
        %v1436 = vunpack.c.l.b16 %v1420
        %v1437 = vunpack.c.l.b16 %v1421
        %v1438 = vpack.c.b16 %v1431, %v1430
        %v1439 = vpack.c.b16 %v1433, %v1432
        %v1440 = vpack.c.b16 %v1435, %v1434
        %v1441 = vpack.c.b16 %v1437, %v1436
        %v1447 = vsel %vm395, %v1411, 0
        %v1450 = vsel %vm395, %v1412, 0
        %v1453 = vsel %vm395, %v1413, 0
        %1455 = vmatpush.bf16.msra.mxu0 0
        %1456 = vmatpush.bf16.msra.mxu0 0
        %1457 = vmatpush.bf16.msra.mxu0 0
        %1458 = vmatpush.bf16.msra.mxu0 0
        %1459 = vmatpush.bf16.msra.mxu0 %v1441
        %1460 = vmatpush.bf16.msra.mxu0 %v1440
        %1461 = vmatpush.bf16.msra.mxu0 %v1439
        %1462 = vmatpush.bf16.msra.mxu0 %v1438
        %1463 = vmatmul.bf16.gmra.mxu0 %v1447
        %v1464 = vpop.f32.mrf.mxu0
        %v1465 = vadd.f32 0.0, %v1464
        %v1466 = vpop.f32.mrf.mxu0
        %v1467 = vadd.f32 0.0, %v1466
        %1468 = vmatmul.bf16.gmra.mxu0 %v1450
        %v1469 = vpop.f32.mrf.mxu0
        %v1470 = vadd.f32 0.0, %v1469
        %v1471 = vpop.f32.mrf.mxu0
        %v1472 = vadd.f32 0.0, %v1471
        %1473 = vmatmul.bf16.gmra.mxu0 %v1453
        %v1474 = vpop.f32.mrf.mxu0
        %v1475 = vadd.f32 0.0, %v1474
        %v1476 = vpop.f32.mrf.mxu0
        %1477 = vdwg.mxu0
        %v1478 = vadd.f32 %v1396, %v1465
        %v1479 = vadd.f32 %v1397, %v1467
        %v1480 = vadd.f32 %v1398, %v1470
        %v1481 = vadd.f32 %v1399, %v1472
        %v1482 = vadd.f32 %v1400, %v1475
        %s1483 = scalar_lea.vmem [#allocation2], 13
        %v1484 = vld [vmem:[%s1483] ss:$7 sm:$0xff]
        %s1485 = scalar_lea.vmem [#allocation2], 69
        %v1486 = vld [vmem:[%s1485] ss:$7 sm:$0xff]
        %s1487 = scalar_lea.vmem [#allocation2], 125
        %v1488 = vld [vmem:[%s1487] ss:$7 sm:$0xff]
        %s1489 = scalar_lea.vmem [#allocation2], 181
        %v1490 = vld [vmem:[%s1489] ss:$7 sm:$0xff]
        %s1491 = scalar_lea.vmem [#allocation2], 237
        %v1492 = vld [vmem:[%s1491] ss:$7 sm:$0x7]
        %v1493 = vpack.c.bf16 %v1486, %v1484
        %v1494 = vpack.c.bf16 %v1490, %v1488
        %v1495 = vpack.c.bf16 %v1492, %v1492
        %v1496 = vld [vmem:[%s1 + $0x1a0] sm:$0xf]
        %v1497 = vld [vmem:[%s1 + $0x1a4] sm:$0xf]
        %v1498 = vld [vmem:[%s1 + $0x1a8] sm:$0xf]
        %v1499 = vld [vmem:[%s1 + $0x1ac] sm:$0xf]
        %v1500 = vld [vmem:[%s1 + $0x1b0] sm:$0xf]
        %v1501 = vld [vmem:[%s1 + $0x1b4] sm:$0xf]
        %v1502 = vld [vmem:[%s1 + $0x1b8] sm:$0xf]
        %v1503 = vld [vmem:[%s1 + $0x1bc] sm:$0xf]
        %v1512 = vunpack.c.l.b16 %v1496
        %v1513 = vunpack.c.l.b16 %v1497
        %v1514 = vunpack.c.l.b16 %v1498
        %v1515 = vunpack.c.l.b16 %v1499
        %v1516 = vunpack.c.l.b16 %v1500
        %v1517 = vunpack.c.l.b16 %v1501
        %v1518 = vunpack.c.l.b16 %v1502
        %v1519 = vunpack.c.l.b16 %v1503
        %v1520 = vpack.c.b16 %v1513, %v1512
        %v1521 = vpack.c.b16 %v1515, %v1514
        %v1522 = vpack.c.b16 %v1517, %v1516
        %v1523 = vpack.c.b16 %v1519, %v1518
        %v1529 = vsel %vm395, %v1493, 0
        %v1532 = vsel %vm395, %v1494, 0
        %v1535 = vsel %vm395, %v1495, 0
        %1537 = vmatpush.bf16.msra.mxu0 0
        %1538 = vmatpush.bf16.msra.mxu0 0
        %1539 = vmatpush.bf16.msra.mxu0 0
        %1540 = vmatpush.bf16.msra.mxu0 0
        %1541 = vmatpush.bf16.msra.mxu0 %v1523
        %1542 = vmatpush.bf16.msra.mxu0 %v1522
        %1543 = vmatpush.bf16.msra.mxu0 %v1521
        %1544 = vmatpush.bf16.msra.mxu0 %v1520
        %1545 = vmatmul.bf16.gmra.mxu0 %v1529
        %v1546 = vpop.f32.mrf.mxu0
        %v1547 = vadd.f32 0.0, %v1546
        %v1548 = vpop.f32.mrf.mxu0
        %v1549 = vadd.f32 0.0, %v1548
        %1550 = vmatmul.bf16.gmra.mxu0 %v1532
        %v1551 = vpop.f32.mrf.mxu0
        %v1552 = vadd.f32 0.0, %v1551
        %v1553 = vpop.f32.mrf.mxu0
        %v1554 = vadd.f32 0.0, %v1553
        %1555 = vmatmul.bf16.gmra.mxu0 %v1535
        %v1556 = vpop.f32.mrf.mxu0
        %v1557 = vadd.f32 0.0, %v1556
        %v1558 = vpop.f32.mrf.mxu0
        %1559 = vdwg.mxu0
        %v1560 = vadd.f32 %v1478, %v1547
        %v1561 = vadd.f32 %v1479, %v1549
        %v1562 = vadd.f32 %v1480, %v1552
        %v1563 = vadd.f32 %v1481, %v1554
        %v1564 = vadd.f32 %v1482, %v1557
        %s1565 = scalar_lea.vmem [#allocation2], 14
        %v1566 = vld [vmem:[%s1565] ss:$7 sm:$0xff]
        %s1567 = scalar_lea.vmem [#allocation2], 70
        %v1568 = vld [vmem:[%s1567] ss:$7 sm:$0xff]
        %s1569 = scalar_lea.vmem [#allocation2], 126
        %v1570 = vld [vmem:[%s1569] ss:$7 sm:$0xff]
        %s1571 = scalar_lea.vmem [#allocation2], 182
        %v1572 = vld [vmem:[%s1571] ss:$7 sm:$0xff]
        %s1573 = scalar_lea.vmem [#allocation2], 238
        %v1574 = vld [vmem:[%s1573] ss:$7 sm:$0x7]
        %v1575 = vpack.c.bf16 %v1568, %v1566
        %v1576 = vpack.c.bf16 %v1572, %v1570
        %v1577 = vpack.c.bf16 %v1574, %v1574
        %v1578 = vld [vmem:[%s1 + $0x1c0] sm:$0xf]
        %v1579 = vld [vmem:[%s1 + $0x1c4] sm:$0xf]
        %v1580 = vld [vmem:[%s1 + $0x1c8] sm:$0xf]
        %v1581 = vld [vmem:[%s1 + $0x1cc] sm:$0xf]
        %v1582 = vld [vmem:[%s1 + $0x1d0] sm:$0xf]
        %v1583 = vld [vmem:[%s1 + $0x1d4] sm:$0xf]
        %v1584 = vld [vmem:[%s1 + $0x1d8] sm:$0xf]
        %v1585 = vld [vmem:[%s1 + $0x1dc] sm:$0xf]
        %v1594 = vunpack.c.l.b16 %v1578
        %v1595 = vunpack.c.l.b16 %v1579
        %v1596 = vunpack.c.l.b16 %v1580
        %v1597 = vunpack.c.l.b16 %v1581
        %v1598 = vunpack.c.l.b16 %v1582
        %v1599 = vunpack.c.l.b16 %v1583
        %v1600 = vunpack.c.l.b16 %v1584
        %v1601 = vunpack.c.l.b16 %v1585
        %v1602 = vpack.c.b16 %v1595, %v1594
        %v1603 = vpack.c.b16 %v1597, %v1596
        %v1604 = vpack.c.b16 %v1599, %v1598
        %v1605 = vpack.c.b16 %v1601, %v1600
        %v1611 = vsel %vm395, %v1575, 0
        %v1614 = vsel %vm395, %v1576, 0
        %v1617 = vsel %vm395, %v1577, 0
        %1619 = vmatpush.bf16.msra.mxu0 0
        %1620 = vmatpush.bf16.msra.mxu0 0
        %1621 = vmatpush.bf16.msra.mxu0 0
        %1622 = vmatpush.bf16.msra.mxu0 0
        %1623 = vmatpush.bf16.msra.mxu0 %v1605
        %1624 = vmatpush.bf16.msra.mxu0 %v1604
        %1625 = vmatpush.bf16.msra.mxu0 %v1603
        %1626 = vmatpush.bf16.msra.mxu0 %v1602
        %1627 = vmatmul.bf16.gmra.mxu0 %v1611
        %v1628 = vpop.f32.mrf.mxu0
        %v1629 = vadd.f32 0.0, %v1628
        %v1630 = vpop.f32.mrf.mxu0
        %v1631 = vadd.f32 0.0, %v1630
        %1632 = vmatmul.bf16.gmra.mxu0 %v1614
        %v1633 = vpop.f32.mrf.mxu0
        %v1634 = vadd.f32 0.0, %v1633
        %v1635 = vpop.f32.mrf.mxu0
        %v1636 = vadd.f32 0.0, %v1635
        %1637 = vmatmul.bf16.gmra.mxu0 %v1617
        %v1638 = vpop.f32.mrf.mxu0
        %v1639 = vadd.f32 0.0, %v1638
        %v1640 = vpop.f32.mrf.mxu0
        %1641 = vdwg.mxu0
        %v1642 = vadd.f32 %v1560, %v1629
        %v1643 = vadd.f32 %v1561, %v1631
        %v1644 = vadd.f32 %v1562, %v1634
        %v1645 = vadd.f32 %v1563, %v1636
        %v1646 = vadd.f32 %v1564, %v1639
        %v1647 = vld [vmem:[%s2] sm:$0x1]
        %v1649 = vperm.slane %v1647, 0
        %v1651 = vadd.f32 %v1642, %v1649
        %v1652 = vadd.f32 %v1643, %v1649
        %v1653 = vadd.f32 %v1644, %v1649
        %v1654 = vadd.f32 %v1645, %v1649
        %v1655 = vadd.f32 %v1646, %v1649
        %v1656 = vxor.u32 %v1651, 2147483648
        %v1657 = vxor.u32 %v1652, 2147483648
        %v1658 = vxor.u32 %v1653, 2147483648
        %v1659 = vxor.u32 %v1654, 2147483648
        %v1660 = vxor.u32 %v1655, 2147483648
        %v1661 = vmul.f32 %v1656, 1.442695
        %v1662 = vpow.pop %v1661
        %v1663 = vmul.f32 %v1657, 1.442695
        %v1664 = vpow.pop %v1663
        %v1665 = vmul.f32 %v1658, 1.442695
        %v1666 = vpow.pop %v1665
        %v1667 = vmul.f32 %v1659, 1.442695
        %v1668 = vpow.pop %v1667
        %v1669 = vmul.f32 %v1660, 1.442695
        %v1670 = vpow.pop %v1669
        %v1671 = vadd.f32 %v1662, 1.0
        %v1672 = vadd.f32 %v1664, 1.0
        %v1673 = vadd.f32 %v1666, 1.0
        %v1674 = vadd.f32 %v1668, 1.0
        %v1675 = vadd.f32 %v1670, 1.0
        %v1676 = vrcp.pop %v1671
        %v1677 = vmul.f32 %v1671, %v1676
        %v1678 = vsub.f32 1.0, %v1677
        %v1679 = vmul.f32 %v1676, %v1678
        %v1680 = vadd.f32 %v1676, %v1679
        %vm1681 = vweird.f32 %v1671
        %vm1682 = vweird.f32 %v1676
        %vm1683 = vmor %vm1681, %vm1682
        %v1684 = vsel %vm1683, %v1676, %v1680
        %v1685 = vand.u32 2147483647, %v1671
        %vm1686 = vcmp.eq.f32.partialorder %v1685, 8.507059e+37
        %v1687 = vand.u32 %v1671, 2147483648
        %v1688 = vor.u32 1.1754944e-38, %v1687
        %v1689 = vsel %vm1686, %v1688, %v1684
        %v1690 = vmul.f32 1.0, %v1689
        %v1691 = vrcp.pop %v1672
        %v1692 = vmul.f32 %v1672, %v1691
        %v1693 = vsub.f32 1.0, %v1692
        %v1694 = vmul.f32 %v1691, %v1693
        %v1695 = vadd.f32 %v1691, %v1694
        %vm1696 = vweird.f32 %v1672
        %vm1697 = vweird.f32 %v1691
        %vm1698 = vmor %vm1696, %vm1697
        %v1699 = vsel %vm1698, %v1691, %v1695
        %v1700 = vand.u32 2147483647, %v1672
        %vm1701 = vcmp.eq.f32.partialorder %v1700, 8.507059e+37
        %v1702 = vand.u32 %v1672, 2147483648
        %v1703 = vor.u32 1.1754944e-38, %v1702
        %v1704 = vsel %vm1701, %v1703, %v1699
        %v1705 = vmul.f32 1.0, %v1704
        %v1706 = vrcp.pop %v1673
        %v1707 = vmul.f32 %v1673, %v1706
        %v1708 = vsub.f32 1.0, %v1707
        %v1709 = vmul.f32 %v1706, %v1708
        %v1710 = vadd.f32 %v1706, %v1709
        %vm1711 = vweird.f32 %v1673
        %vm1712 = vweird.f32 %v1706
        %vm1713 = vmor %vm1711, %vm1712
        %v1714 = vsel %vm1713, %v1706, %v1710
        %v1715 = vand.u32 2147483647, %v1673
        %vm1716 = vcmp.eq.f32.partialorder %v1715, 8.507059e+37
        %v1717 = vand.u32 %v1673, 2147483648
        %v1718 = vor.u32 1.1754944e-38, %v1717
        %v1719 = vsel %vm1716, %v1718, %v1714
        %v1720 = vmul.f32 1.0, %v1719
        %v1721 = vrcp.pop %v1674
        %v1722 = vmul.f32 %v1674, %v1721
        %v1723 = vsub.f32 1.0, %v1722
        %v1724 = vmul.f32 %v1721, %v1723
        %v1725 = vadd.f32 %v1721, %v1724
        %vm1726 = vweird.f32 %v1674
        %vm1727 = vweird.f32 %v1721
        %vm1728 = vmor %vm1726, %vm1727
        %v1729 = vsel %vm1728, %v1721, %v1725
        %v1730 = vand.u32 2147483647, %v1674
        %vm1731 = vcmp.eq.f32.partialorder %v1730, 8.507059e+37
        %v1732 = vand.u32 %v1674, 2147483648
        %v1733 = vor.u32 1.1754944e-38, %v1732
        %v1734 = vsel %vm1731, %v1733, %v1729
        %v1735 = vmul.f32 1.0, %v1734
        %v1736 = vrcp.pop %v1675
        %v1737 = vmul.f32 %v1675, %v1736
        %v1738 = vsub.f32 1.0, %v1737
        %v1739 = vmul.f32 %v1736, %v1738
        %v1740 = vadd.f32 %v1736, %v1739
        %vm1741 = vweird.f32 %v1675
        %vm1742 = vweird.f32 %v1736
        %vm1743 = vmor %vm1741, %vm1742
        %v1744 = vsel %vm1743, %v1736, %v1740
        %v1745 = vand.u32 2147483647, %v1675
        %vm1746 = vcmp.eq.f32.partialorder %v1745, 8.507059e+37
        %v1747 = vand.u32 %v1675, 2147483648
        %v1748 = vor.u32 1.1754944e-38, %v1747
        %v1749 = vsel %vm1746, %v1748, %v1744
        %v1750 = vmul.f32 1.0, %v1749
        %1756 = vrot.lane.b32.xlu0 %v1690, 96
        %v1757 = vpop.permute.xlu0 %1756
        %1758 = vrot.lane.b32.xlu0 %v1705, 96
        %v1759 = vpop.permute.xlu0 %1758
        %1760 = vrot.lane.b32.xlu0 %v1720, 96
        %v1761 = vpop.permute.xlu0 %1760
        %1762 = vrot.lane.b32.xlu0 %v1735, 96
        %v1763 = vpop.permute.xlu0 %1762
        %1764 = vrot.lane.b32.xlu0 %v1750, 96
        %v1765 = vpop.permute.xlu0 %1764
        %v1771 = vmul.f32 %v1651, %v1757
        %v1772 = vmul.f32 %v1652, %v1759
        %v1773 = vmul.f32 %v1653, %v1761
        %v1774 = vmul.f32 %v1654, %v1763
        %v1775 = vmul.f32 %v1655, %v1765
        %vm1776 = vcmask 261120
        %1777 = vst.msk [vmem:[#allocation3] sm:$0xff] %vm1776, %v1771
        %1778 = vst.msk [vmem:[#allocation3 + $0x8] sm:$0xff] %vm1776, %v1772
        %1779 = vst.msk [vmem:[#allocation3 + $0x10] sm:$0xff] %vm1776, %v1773
        %1780 = vst.msk [vmem:[#allocation3 + $0x18] sm:$0xff] %vm1776, %v1774
        %vm1781 = vcmask 256000
        %1782 = vst.msk [vmem:[#allocation3 + $0x20] sm:$0x7] %vm1781, %v1775
        %v1783 = vld [vmem:[#allocation3] ss:$7 sm:$0x7]
        %v1784 = vpack.c.bf16 %v1783, %v1783
        %v1785 = vld [vmem:[%s3] sm:$0xf]
        %v1786 = vld [vmem:[%s3 + $0x4] sm:$0xf]
        %v1787 = vld [vmem:[%s3 + $0x8] sm:$0xf]
        %v1788 = vld [vmem:[%s3 + $0xc] sm:$0xf]
        %s1789 = scalar_lea.vmem [#allocation3], 1
        %v1790 = vld [vmem:[%s1789] ss:$7 sm:$0x7]
        %v1791 = vpack.c.bf16 %v1790, %v1790
        %v1792 = vld [vmem:[%s3 + $0x10] sm:$0xf]
        %v1793 = vld [vmem:[%s3 + $0x14] sm:$0xf]
        %v1794 = vld [vmem:[%s3 + $0x18] sm:$0xf]
        %v1795 = vld [vmem:[%s3 + $0x1c] sm:$0xf]
        %v1800 = vunpack.c.l.b16 %v1792
        %v1801 = vunpack.c.l.b16 %v1793
        %v1802 = vunpack.c.l.b16 %v1794
        %v1803 = vunpack.c.l.b16 %v1795
        %v1804 = vpack.c.b16 %v1801, %v1800
        %v1805 = vpack.c.b16 %v1803, %v1802
        %v1809 = vsel %vm1776, %v1791, 0
        %1811 = vmatpush.bf16.msra.mxu0 0
        %1812 = vmatpush.bf16.msra.mxu0 0
        %1813 = vmatpush.bf16.msra.mxu0 0
        %1814 = vmatpush.bf16.msra.mxu0 0
        %1815 = vmatpush.bf16.msra.mxu0 0
        %1816 = vmatpush.bf16.msra.mxu0 0
        %1817 = vmatpush.bf16.msra.mxu0 %v1805
        %1818 = vmatpush.bf16.msra.mxu0 %v1804
        %1819 = vmatmul.bf16.gmra.mxu0 %v1809
        %v1820 = vpop.f32.mrf.mxu0
        %v1821 = vadd.f32 0.0, %v1820
        %v1822 = vpop.f32.mrf.mxu0
        %1823 = vdwg.mxu0
        %v1828 = vunpack.c.l.b16 %v1785
        %v1829 = vunpack.c.l.b16 %v1786
        %v1830 = vunpack.c.l.b16 %v1787
        %v1831 = vunpack.c.l.b16 %v1788
        %v1832 = vpack.c.b16 %v1829, %v1828
        %v1833 = vpack.c.b16 %v1831, %v1830
        %v1837 = vsel %vm1776, %v1784, 0
        %1839 = vmatpush.bf16.msra.mxu0 0
        %1840 = vmatpush.bf16.msra.mxu0 0
        %1841 = vmatpush.bf16.msra.mxu0 0
        %1842 = vmatpush.bf16.msra.mxu0 0
        %1843 = vmatpush.bf16.msra.mxu0 0
        %1844 = vmatpush.bf16.msra.mxu0 0
        %1845 = vmatpush.bf16.msra.mxu0 %v1833
        %1846 = vmatpush.bf16.msra.mxu0 %v1832
        %1847 = vmatmul.bf16.gmra.mxu0 %v1837
        %v1848 = vpop.f32.mrf.mxu0
        %v1849 = vadd.f32 %v1821, %v1848
        %v1850 = vpop.f32.mrf.mxu0
        %1851 = vdwg.mxu0
        %s1852 = scalar_lea.vmem [#allocation3], 2
        %v1853 = vld [vmem:[%s1852] ss:$7 sm:$0x7]
        %v1854 = vpack.c.bf16 %v1853, %v1853
        %v1855 = vld [vmem:[%s3 + $0x20] sm:$0xf]
        %v1856 = vld [vmem:[%s3 + $0x24] sm:$0xf]
        %v1857 = vld [vmem:[%s3 + $0x28] sm:$0xf]
        %v1858 = vld [vmem:[%s3 + $0x2c] sm:$0xf]
        %v1863 = vunpack.c.l.b16 %v1855
        %v1864 = vunpack.c.l.b16 %v1856
        %v1865 = vunpack.c.l.b16 %v1857
        %v1866 = vunpack.c.l.b16 %v1858
        %v1867 = vpack.c.b16 %v1864, %v1863
        %v1868 = vpack.c.b16 %v1866, %v1865
        %v1872 = vsel %vm1776, %v1854, 0
        %1874 = vmatpush.bf16.msra.mxu0 0
        %1875 = vmatpush.bf16.msra.mxu0 0
        %1876 = vmatpush.bf16.msra.mxu0 0
        %1877 = vmatpush.bf16.msra.mxu0 0
        %1878 = vmatpush.bf16.msra.mxu0 0
        %1879 = vmatpush.bf16.msra.mxu0 0
        %1880 = vmatpush.bf16.msra.mxu0 %v1868
        %1881 = vmatpush.bf16.msra.mxu0 %v1867
        %1882 = vmatmul.bf16.gmra.mxu0 %v1872
        %v1883 = vpop.f32.mrf.mxu0
        %v1884 = vadd.f32 0.0, %v1883
        %v1885 = vpop.f32.mrf.mxu0
        %1886 = vdwg.mxu0
        %v1887 = vadd.f32 %v1849, %v1884
        %s1888 = scalar_lea.vmem [#allocation3], 3
        %v1889 = vld [vmem:[%s1888] ss:$7 sm:$0x7]
        %v1890 = vpack.c.bf16 %v1889, %v1889
        %v1891 = vld [vmem:[%s3 + $0x30] sm:$0xf]
        %v1892 = vld [vmem:[%s3 + $0x34] sm:$0xf]
        %v1893 = vld [vmem:[%s3 + $0x38] sm:$0xf]
        %v1894 = vld [vmem:[%s3 + $0x3c] sm:$0xf]
        %v1899 = vunpack.c.l.b16 %v1891
        %v1900 = vunpack.c.l.b16 %v1892
        %v1901 = vunpack.c.l.b16 %v1893
        %v1902 = vunpack.c.l.b16 %v1894
        %v1903 = vpack.c.b16 %v1900, %v1899
        %v1904 = vpack.c.b16 %v1902, %v1901
        %v1908 = vsel %vm1776, %v1890, 0
        %1910 = vmatpush.bf16.msra.mxu0 0
        %1911 = vmatpush.bf16.msra.mxu0 0
        %1912 = vmatpush.bf16.msra.mxu0 0
        %1913 = vmatpush.bf16.msra.mxu0 0
        %1914 = vmatpush.bf16.msra.mxu0 0
        %1915 = vmatpush.bf16.msra.mxu0 0
        %1916 = vmatpush.bf16.msra.mxu0 %v1904
        %1917 = vmatpush.bf16.msra.mxu0 %v1903
        %1918 = vmatmul.bf16.gmra.mxu0 %v1908
        %v1919 = vpop.f32.mrf.mxu0
        %v1920 = vadd.f32 0.0, %v1919
        %v1921 = vpop.f32.mrf.mxu0
        %1922 = vdwg.mxu0
        %v1923 = vadd.f32 %v1887, %v1920
        %s1924 = scalar_lea.vmem [#allocation3], 4
        %v1925 = vld [vmem:[%s1924] ss:$7 sm:$0x7]
        %v1926 = vpack.c.bf16 %v1925, %v1925
        %v1927 = vld [vmem:[%s3 + $0x40] sm:$0xf]
        %v1928 = vld [vmem:[%s3 + $0x44] sm:$0xf]
        %v1929 = vld [vmem:[%s3 + $0x48] sm:$0xf]
        %v1930 = vld [vmem:[%s3 + $0x4c] sm:$0xf]
        %v1935 = vunpack.c.l.b16 %v1927
        %v1936 = vunpack.c.l.b16 %v1928
        %v1937 = vunpack.c.l.b16 %v1929
        %v1938 = vunpack.c.l.b16 %v1930
        %v1939 = vpack.c.b16 %v1936, %v1935
        %v1940 = vpack.c.b16 %v1938, %v1937
        %v1944 = vsel %vm1776, %v1926, 0
        %1946 = vmatpush.bf16.msra.mxu0 0
        %1947 = vmatpush.bf16.msra.mxu0 0
        %1948 = vmatpush.bf16.msra.mxu0 0
        %1949 = vmatpush.bf16.msra.mxu0 0
        %1950 = vmatpush.bf16.msra.mxu0 0
        %1951 = vmatpush.bf16.msra.mxu0 0
        %1952 = vmatpush.bf16.msra.mxu0 %v1940
        %1953 = vmatpush.bf16.msra.mxu0 %v1939
        %1954 = vmatmul.bf16.gmra.mxu0 %v1944
        %v1955 = vpop.f32.mrf.mxu0
        %v1956 = vadd.f32 0.0, %v1955
        %v1957 = vpop.f32.mrf.mxu0
        %1958 = vdwg.mxu0
        %v1959 = vadd.f32 %v1923, %v1956
        %s1960 = scalar_lea.vmem [#allocation3], 5
        %v1961 = vld [vmem:[%s1960] ss:$7 sm:$0x7]
        %v1962 = vpack.c.bf16 %v1961, %v1961
        %v1963 = vld [vmem:[%s3 + $0x50] sm:$0xf]
        %v1964 = vld [vmem:[%s3 + $0x54] sm:$0xf]
        %v1965 = vld [vmem:[%s3 + $0x58] sm:$0xf]
        %v1966 = vld [vmem:[%s3 + $0x5c] sm:$0xf]
        %v1971 = vunpack.c.l.b16 %v1963
        %v1972 = vunpack.c.l.b16 %v1964
        %v1973 = vunpack.c.l.b16 %v1965
        %v1974 = vunpack.c.l.b16 %v1966
        %v1975 = vpack.c.b16 %v1972, %v1971
        %v1976 = vpack.c.b16 %v1974, %v1973
        %v1980 = vsel %vm1776, %v1962, 0
        %1982 = vmatpush.bf16.msra.mxu0 0
        %1983 = vmatpush.bf16.msra.mxu0 0
        %1984 = vmatpush.bf16.msra.mxu0 0
        %1985 = vmatpush.bf16.msra.mxu0 0
        %1986 = vmatpush.bf16.msra.mxu0 0
        %1987 = vmatpush.bf16.msra.mxu0 0
        %1988 = vmatpush.bf16.msra.mxu0 %v1976
        %1989 = vmatpush.bf16.msra.mxu0 %v1975
        %1990 = vmatmul.bf16.gmra.mxu0 %v1980
        %v1991 = vpop.f32.mrf.mxu0
        %v1992 = vadd.f32 0.0, %v1991
        %v1993 = vpop.f32.mrf.mxu0
        %1994 = vdwg.mxu0
        %v1995 = vadd.f32 %v1959, %v1992
        %s1996 = scalar_lea.vmem [#allocation3], 6
        %v1997 = vld [vmem:[%s1996] ss:$7 sm:$0x7]
        %v1998 = vpack.c.bf16 %v1997, %v1997
        %v1999 = vld [vmem:[%s3 + $0x60] sm:$0xf]
        %v2000 = vld [vmem:[%s3 + $0x64] sm:$0xf]
        %v2001 = vld [vmem:[%s3 + $0x68] sm:$0xf]
        %v2002 = vld [vmem:[%s3 + $0x6c] sm:$0xf]
        %v2007 = vunpack.c.l.b16 %v1999
        %v2008 = vunpack.c.l.b16 %v2000
        %v2009 = vunpack.c.l.b16 %v2001
        %v2010 = vunpack.c.l.b16 %v2002
        %v2011 = vpack.c.b16 %v2008, %v2007
        %v2012 = vpack.c.b16 %v2010, %v2009
        %v2016 = vsel %vm1776, %v1998, 0
        %2018 = vmatpush.bf16.msra.mxu0 0
        %2019 = vmatpush.bf16.msra.mxu0 0
        %2020 = vmatpush.bf16.msra.mxu0 0
        %2021 = vmatpush.bf16.msra.mxu0 0
        %2022 = vmatpush.bf16.msra.mxu0 0
        %2023 = vmatpush.bf16.msra.mxu0 0
        %2024 = vmatpush.bf16.msra.mxu0 %v2012
        %2025 = vmatpush.bf16.msra.mxu0 %v2011
        %2026 = vmatmul.bf16.gmra.mxu0 %v2016
        %v2027 = vpop.f32.mrf.mxu0
        %v2028 = vadd.f32 0.0, %v2027
        %v2029 = vpop.f32.mrf.mxu0
        %2030 = vdwg.mxu0
        %v2031 = vadd.f32 %v1995, %v2028
        %s2032 = scalar_lea.vmem [#allocation3], 7
        %v2033 = vld [vmem:[%s2032] ss:$7 sm:$0x7]
        %v2034 = vpack.c.bf16 %v2033, %v2033
        %v2035 = vld [vmem:[%s3 + $0x70] sm:$0xf]
        %v2036 = vld [vmem:[%s3 + $0x74] sm:$0xf]
        %v2037 = vld [vmem:[%s3 + $0x78] sm:$0xf]
        %v2038 = vld [vmem:[%s3 + $0x7c] sm:$0xf]
        %v2043 = vunpack.c.l.b16 %v2035
        %v2044 = vunpack.c.l.b16 %v2036
        %v2045 = vunpack.c.l.b16 %v2037
        %v2046 = vunpack.c.l.b16 %v2038
        %v2047 = vpack.c.b16 %v2044, %v2043
        %v2048 = vpack.c.b16 %v2046, %v2045
        %v2052 = vsel %vm1776, %v2034, 0
        %2054 = vmatpush.bf16.msra.mxu0 0
        %2055 = vmatpush.bf16.msra.mxu0 0
        %2056 = vmatpush.bf16.msra.mxu0 0
        %2057 = vmatpush.bf16.msra.mxu0 0
        %2058 = vmatpush.bf16.msra.mxu0 0
        %2059 = vmatpush.bf16.msra.mxu0 0
        %2060 = vmatpush.bf16.msra.mxu0 %v2048
        %2061 = vmatpush.bf16.msra.mxu0 %v2047
        %2062 = vmatmul.bf16.gmra.mxu0 %v2052
        %v2063 = vpop.f32.mrf.mxu0
        %v2064 = vadd.f32 0.0, %v2063
        %v2065 = vpop.f32.mrf.mxu0
        %2066 = vdwg.mxu0
        %v2067 = vadd.f32 %v2031, %v2064
        %s2068 = scalar_lea.vmem [#allocation3], 8
        %v2069 = vld [vmem:[%s2068] ss:$7 sm:$0x7]
        %v2070 = vpack.c.bf16 %v2069, %v2069
        %v2071 = vld [vmem:[%s3 + $0x80] sm:$0xf]
        %v2072 = vld [vmem:[%s3 + $0x84] sm:$0xf]
        %v2073 = vld [vmem:[%s3 + $0x88] sm:$0xf]
        %v2074 = vld [vmem:[%s3 + $0x8c] sm:$0xf]
        %v2079 = vunpack.c.l.b16 %v2071
        %v2080 = vunpack.c.l.b16 %v2072
        %v2081 = vunpack.c.l.b16 %v2073
        %v2082 = vunpack.c.l.b16 %v2074
        %v2083 = vpack.c.b16 %v2080, %v2079
        %v2084 = vpack.c.b16 %v2082, %v2081
        %v2088 = vsel %vm1776, %v2070, 0
        %2090 = vmatpush.bf16.msra.mxu0 0
        %2091 = vmatpush.bf16.msra.mxu0 0
        %2092 = vmatpush.bf16.msra.mxu0 0
        %2093 = vmatpush.bf16.msra.mxu0 0
        %2094 = vmatpush.bf16.msra.mxu0 0
        %2095 = vmatpush.bf16.msra.mxu0 0
        %2096 = vmatpush.bf16.msra.mxu0 %v2084
        %2097 = vmatpush.bf16.msra.mxu0 %v2083
        %2098 = vmatmul.bf16.gmra.mxu0 %v2088
        %v2099 = vpop.f32.mrf.mxu0
        %v2100 = vadd.f32 0.0, %v2099
        %v2101 = vpop.f32.mrf.mxu0
        %2102 = vdwg.mxu0
        %v2103 = vadd.f32 %v2067, %v2100
        %s2104 = scalar_lea.vmem [#allocation3], 9
        %v2105 = vld [vmem:[%s2104] ss:$7 sm:$0x7]
        %v2106 = vpack.c.bf16 %v2105, %v2105
        %v2107 = vld [vmem:[%s3 + $0x90] sm:$0xf]
        %v2108 = vld [vmem:[%s3 + $0x94] sm:$0xf]
        %v2109 = vld [vmem:[%s3 + $0x98] sm:$0xf]
        %v2110 = vld [vmem:[%s3 + $0x9c] sm:$0xf]
        %v2115 = vunpack.c.l.b16 %v2107
        %v2116 = vunpack.c.l.b16 %v2108
        %v2117 = vunpack.c.l.b16 %v2109
        %v2118 = vunpack.c.l.b16 %v2110
        %v2119 = vpack.c.b16 %v2116, %v2115
        %v2120 = vpack.c.b16 %v2118, %v2117
        %v2124 = vsel %vm1776, %v2106, 0
        %2126 = vmatpush.bf16.msra.mxu0 0
        %2127 = vmatpush.bf16.msra.mxu0 0
        %2128 = vmatpush.bf16.msra.mxu0 0
        %2129 = vmatpush.bf16.msra.mxu0 0
        %2130 = vmatpush.bf16.msra.mxu0 0
        %2131 = vmatpush.bf16.msra.mxu0 0
        %2132 = vmatpush.bf16.msra.mxu0 %v2120
        %2133 = vmatpush.bf16.msra.mxu0 %v2119
        %2134 = vmatmul.bf16.gmra.mxu0 %v2124
        %v2135 = vpop.f32.mrf.mxu0
        %v2136 = vadd.f32 0.0, %v2135
        %v2137 = vpop.f32.mrf.mxu0
        %2138 = vdwg.mxu0
        %v2139 = vadd.f32 %v2103, %v2136
        %s2140 = scalar_lea.vmem [#allocation3], 10
        %v2141 = vld [vmem:[%s2140] ss:$7 sm:$0x7]
        %v2142 = vpack.c.bf16 %v2141, %v2141
        %v2143 = vld [vmem:[%s3 + $0xa0] sm:$0xf]
        %v2144 = vld [vmem:[%s3 + $0xa4] sm:$0xf]
        %v2145 = vld [vmem:[%s3 + $0xa8] sm:$0xf]
        %v2146 = vld [vmem:[%s3 + $0xac] sm:$0xf]
        %v2151 = vunpack.c.l.b16 %v2143
        %v2152 = vunpack.c.l.b16 %v2144
        %v2153 = vunpack.c.l.b16 %v2145
        %v2154 = vunpack.c.l.b16 %v2146
        %v2155 = vpack.c.b16 %v2152, %v2151
        %v2156 = vpack.c.b16 %v2154, %v2153
        %v2160 = vsel %vm1776, %v2142, 0
        %2162 = vmatpush.bf16.msra.mxu0 0
        %2163 = vmatpush.bf16.msra.mxu0 0
        %2164 = vmatpush.bf16.msra.mxu0 0
        %2165 = vmatpush.bf16.msra.mxu0 0
        %2166 = vmatpush.bf16.msra.mxu0 0
        %2167 = vmatpush.bf16.msra.mxu0 0
        %2168 = vmatpush.bf16.msra.mxu0 %v2156
        %2169 = vmatpush.bf16.msra.mxu0 %v2155
        %2170 = vmatmul.bf16.gmra.mxu0 %v2160
        %v2171 = vpop.f32.mrf.mxu0
        %v2172 = vadd.f32 0.0, %v2171
        %v2173 = vpop.f32.mrf.mxu0
        %2174 = vdwg.mxu0
        %v2175 = vadd.f32 %v2139, %v2172
        %s2176 = scalar_lea.vmem [#allocation3], 11
        %v2177 = vld [vmem:[%s2176] ss:$7 sm:$0x7]
        %v2178 = vpack.c.bf16 %v2177, %v2177
        %v2179 = vld [vmem:[%s3 + $0xb0] sm:$0xf]
        %v2180 = vld [vmem:[%s3 + $0xb4] sm:$0xf]
        %v2181 = vld [vmem:[%s3 + $0xb8] sm:$0xf]
        %v2182 = vld [vmem:[%s3 + $0xbc] sm:$0xf]
        %v2187 = vunpack.c.l.b16 %v2179
        %v2188 = vunpack.c.l.b16 %v2180
        %v2189 = vunpack.c.l.b16 %v2181
        %v2190 = vunpack.c.l.b16 %v2182
        %v2191 = vpack.c.b16 %v2188, %v2187
        %v2192 = vpack.c.b16 %v2190, %v2189
        %v2196 = vsel %vm1776, %v2178, 0
        %2198 = vmatpush.bf16.msra.mxu0 0
        %2199 = vmatpush.bf16.msra.mxu0 0
        %2200 = vmatpush.bf16.msra.mxu0 0
        %2201 = vmatpush.bf16.msra.mxu0 0
        %2202 = vmatpush.bf16.msra.mxu0 0
        %2203 = vmatpush.bf16.msra.mxu0 0
        %2204 = vmatpush.bf16.msra.mxu0 %v2192
        %2205 = vmatpush.bf16.msra.mxu0 %v2191
        %2206 = vmatmul.bf16.gmra.mxu0 %v2196
        %v2207 = vpop.f32.mrf.mxu0
        %v2208 = vadd.f32 0.0, %v2207
        %v2209 = vpop.f32.mrf.mxu0
        %2210 = vdwg.mxu0
        %v2211 = vadd.f32 %v2175, %v2208
        %s2212 = scalar_lea.vmem [#allocation3], 12
        %v2213 = vld [vmem:[%s2212] ss:$7 sm:$0x7]
        %v2214 = vpack.c.bf16 %v2213, %v2213
        %v2215 = vld [vmem:[%s3 + $0xc0] sm:$0xf]
        %v2216 = vld [vmem:[%s3 + $0xc4] sm:$0xf]
        %v2217 = vld [vmem:[%s3 + $0xc8] sm:$0xf]
        %v2218 = vld [vmem:[%s3 + $0xcc] sm:$0xf]
        %v2223 = vunpack.c.l.b16 %v2215
        %v2224 = vunpack.c.l.b16 %v2216
        %v2225 = vunpack.c.l.b16 %v2217
        %v2226 = vunpack.c.l.b16 %v2218
        %v2227 = vpack.c.b16 %v2224, %v2223
        %v2228 = vpack.c.b16 %v2226, %v2225
        %v2232 = vsel %vm1776, %v2214, 0
        %2234 = vmatpush.bf16.msra.mxu0 0
        %2235 = vmatpush.bf16.msra.mxu0 0
        %2236 = vmatpush.bf16.msra.mxu0 0
        %2237 = vmatpush.bf16.msra.mxu0 0
        %2238 = vmatpush.bf16.msra.mxu0 0
        %2239 = vmatpush.bf16.msra.mxu0 0
        %2240 = vmatpush.bf16.msra.mxu0 %v2228
        %2241 = vmatpush.bf16.msra.mxu0 %v2227
        %2242 = vmatmul.bf16.gmra.mxu0 %v2232
        %v2243 = vpop.f32.mrf.mxu0
        %v2244 = vadd.f32 0.0, %v2243
        %v2245 = vpop.f32.mrf.mxu0
        %2246 = vdwg.mxu0
        %v2247 = vadd.f32 %v2211, %v2244
        %s2248 = scalar_lea.vmem [#allocation3], 13
        %v2249 = vld [vmem:[%s2248] ss:$7 sm:$0x7]
        %v2250 = vpack.c.bf16 %v2249, %v2249
        %v2251 = vld [vmem:[%s3 + $0xd0] sm:$0xf]
        %v2252 = vld [vmem:[%s3 + $0xd4] sm:$0xf]
        %v2253 = vld [vmem:[%s3 + $0xd8] sm:$0xf]
        %v2254 = vld [vmem:[%s3 + $0xdc] sm:$0xf]
        %v2259 = vunpack.c.l.b16 %v2251
        %v2260 = vunpack.c.l.b16 %v2252
        %v2261 = vunpack.c.l.b16 %v2253
        %v2262 = vunpack.c.l.b16 %v2254
        %v2263 = vpack.c.b16 %v2260, %v2259
        %v2264 = vpack.c.b16 %v2262, %v2261
        %v2268 = vsel %vm1776, %v2250, 0
        %2270 = vmatpush.bf16.msra.mxu0 0
        %2271 = vmatpush.bf16.msra.mxu0 0
        %2272 = vmatpush.bf16.msra.mxu0 0
        %2273 = vmatpush.bf16.msra.mxu0 0
        %2274 = vmatpush.bf16.msra.mxu0 0
        %2275 = vmatpush.bf16.msra.mxu0 0
        %2276 = vmatpush.bf16.msra.mxu0 %v2264
        %2277 = vmatpush.bf16.msra.mxu0 %v2263
        %2278 = vmatmul.bf16.gmra.mxu0 %v2268
        %v2279 = vpop.f32.mrf.mxu0
        %v2280 = vadd.f32 0.0, %v2279
        %v2281 = vpop.f32.mrf.mxu0
        %2282 = vdwg.mxu0
        %v2283 = vadd.f32 %v2247, %v2280
        %s2284 = scalar_lea.vmem [#allocation3], 14
        %v2285 = vld [vmem:[%s2284] ss:$7 sm:$0x7]
        %v2286 = vpack.c.bf16 %v2285, %v2285
        %v2287 = vld [vmem:[%s3 + $0xe0] sm:$0xf]
        %v2288 = vld [vmem:[%s3 + $0xe4] sm:$0xf]
        %v2289 = vld [vmem:[%s3 + $0xe8] sm:$0xf]
        %v2290 = vld [vmem:[%s3 + $0xec] sm:$0xf]
        %v2295 = vunpack.c.l.b16 %v2287
        %v2296 = vunpack.c.l.b16 %v2288
        %v2297 = vunpack.c.l.b16 %v2289
        %v2298 = vunpack.c.l.b16 %v2290
        %v2299 = vpack.c.b16 %v2296, %v2295
        %v2300 = vpack.c.b16 %v2298, %v2297
        %v2304 = vsel %vm1776, %v2286, 0
        %2306 = vmatpush.bf16.msra.mxu0 0
        %2307 = vmatpush.bf16.msra.mxu0 0
        %2308 = vmatpush.bf16.msra.mxu0 0
        %2309 = vmatpush.bf16.msra.mxu0 0
        %2310 = vmatpush.bf16.msra.mxu0 0
        %2311 = vmatpush.bf16.msra.mxu0 0
        %2312 = vmatpush.bf16.msra.mxu0 %v2300
        %2313 = vmatpush.bf16.msra.mxu0 %v2299
        %2314 = vmatmul.bf16.gmra.mxu0 %v2304
        %v2315 = vpop.f32.mrf.mxu0
        %v2316 = vadd.f32 0.0, %v2315
        %v2317 = vpop.f32.mrf.mxu0
        %2318 = vdwg.mxu0
        %v2319 = vadd.f32 %v2283, %v2316
        %v2320 = vld [vmem:[%s4] sm:$0x1]
        %v2322 = vperm.slane %v2320, 0
        %v2324 = vadd.f32 %v2319, %v2322
        %v2325 = vxor.u32 %v2324, 2147483648
        %v2326 = vmul.f32 %v2325, 1.442695
        %v2327 = vpow.pop %v2326
        %v2328 = vadd.f32 %v2327, 1.0
        %v2329 = vrcp.pop %v2328
        %v2330 = vmul.f32 %v2328, %v2329
        %v2331 = vsub.f32 1.0, %v2330
        %v2332 = vmul.f32 %v2329, %v2331
        %v2333 = vadd.f32 %v2329, %v2332
        %vm2334 = vweird.f32 %v2328
        %vm2335 = vweird.f32 %v2329
        %vm2336 = vmor %vm2334, %vm2335
        %v2337 = vsel %vm2336, %v2329, %v2333
        %v2338 = vand.u32 2147483647, %v2328
        %vm2339 = vcmp.eq.f32.partialorder %v2338, 8.507059e+37
        %v2340 = vand.u32 %v2328, 2147483648
        %v2341 = vor.u32 1.1754944e-38, %v2340
        %v2342 = vsel %vm2339, %v2341, %v2337
        %v2343 = vmul.f32 1.0, %v2342
        %2345 = vrot.lane.b32.xlu0 %v2343, 64
        %v2346 = vpop.permute.xlu0 %2345
        %v2348 = vmul.f32 %v2324, %v2346
        %vm2349 = vcmask 518144
        %v2350 = vsel %vm2349, %v2348, 0.0
        %v2351 = vrot.slane %v2350, 4
        %v2352 = vadd.f32 %v2350, %v2351
        %v2353 = vrot.slane %v2352, 2
        %v2354 = vadd.f32 %v2352, %v2353
        %v2355 = vrot.slane %v2354, 1
        %v2356 = vadd.f32 %v2354, %v2355
        %v2357 = vrcp.pop 3.0
        %v2358 = vmul.f32 3.0, %v2357
        %v2359 = vsub.f32 1.0, %v2358
        %v2360 = vmul.f32 %v2357, %v2359
        %v2361 = vadd.f32 %v2357, %v2360
        %vm2362 = vweird.f32 %v2357
        %v2363 = vsel %vm2362, %v2357, %v2361
        %v2364 = vmul.f32 %v2356, %v2363
        %v2365 = vpack.c.bf16 %v2364, %v2364
        %v2366 = vld [vmem:[%s5] sm:$0xf]
        %v2367 = vld [vmem:[%s5 + $0x4] sm:$0xf]
        %v2368 = vld [vmem:[%s5 + $0x8] sm:$0xf]
        %v2369 = vld [vmem:[%s5 + $0xc] sm:$0xf]
        %v2370 = vld [vmem:[%s5 + $0x10] sm:$0xf]
        %v2371 = vld [vmem:[%s5 + $0x14] sm:$0xf]
        %v2372 = vld [vmem:[%s5 + $0x18] sm:$0xf]
        %v2373 = vld [vmem:[%s5 + $0x1c] sm:$0xf]
        %v2374 = vld [vmem:[%s6] sm:$0x1]
        %v2383 = vunpack.c.l.b16 %v2366
        %v2384 = vunpack.c.l.b16 %v2367
        %v2385 = vunpack.c.l.b16 %v2368
        %v2386 = vunpack.c.l.b16 %v2369
        %v2387 = vunpack.c.l.b16 %v2370
        %v2388 = vunpack.c.l.b16 %v2371
        %v2389 = vunpack.c.l.b16 %v2372
        %v2390 = vunpack.c.l.b16 %v2373
        %v2391 = vpack.c.b16 %v2384, %v2383
        %v2392 = vpack.c.b16 %v2386, %v2385
        %v2393 = vpack.c.b16 %v2388, %v2387
        %v2394 = vpack.c.b16 %v2390, %v2389
        %v2400 = vsel %vm395, %v2365, 0
        %2402 = vmatpush.bf16.msra.mxu0 0
        %2403 = vmatpush.bf16.msra.mxu0 0
        %2404 = vmatpush.bf16.msra.mxu0 0
        %2405 = vmatpush.bf16.msra.mxu0 0
        %2406 = vmatpush.bf16.msra.mxu0 %v2394
        %2407 = vmatpush.bf16.msra.mxu0 %v2393
        %2408 = vmatpush.bf16.msra.mxu0 %v2392
        %2409 = vmatpush.bf16.msra.mxu0 %v2391
        %2410 = vmatmul.bf16.gmra.mxu0 %v2400
        %v2411 = vpop.f32.mrf.mxu0
        %v2412 = vadd.f32 %v2374, %v2411
        %v2413 = vpop.f32.mrf.mxu0
        %2414 = vdwg.mxu0
        %v2415 = vpack.c.bf16 %v2412, %v2412
        %v2416 = vld [vmem:[%s7] sm:$0xf]
        %v2417 = vld [vmem:[%s7 + $0x4] sm:$0xf]
        %v2418 = vld [vmem:[%s7 + $0x8] sm:$0xf]
        %v2419 = vld [vmem:[%s7 + $0xc] sm:$0xf]
        %v2420 = vld [vmem:[%s7 + $0x10] sm:$0xf]
        %v2421 = vld [vmem:[%s7 + $0x14] sm:$0xf]
        %v2422 = vld [vmem:[%s7 + $0x18] sm:$0xf]
        %v2423 = vld [vmem:[%s7 + $0x1c] sm:$0xf]
        %v2424 = vld [vmem:[%s7 + $0x20] sm:$0xf]
        %v2425 = vld [vmem:[%s7 + $0x24] sm:$0xf]
        %v2426 = vld [vmem:[%s7 + $0x28] sm:$0xf]
        %v2427 = vld [vmem:[%s7 + $0x2c] sm:$0xf]
        %v2428 = vld [vmem:[%s7 + $0x30] sm:$0xf]
        %v2429 = vld [vmem:[%s7 + $0x34] sm:$0xf]
        %v2430 = vld [vmem:[%s7 + $0x38] sm:$0xf]
        %v2431 = vld [vmem:[%s7 + $0x3c] sm:$0xf]
        %v2432 = vld [vmem:[%s8] sm:$0x1]
        %v2449 = vunpack.c.l.b16 %v2416
        %v2450 = vunpack.c.l.b16 %v2417
        %v2451 = vunpack.c.l.b16 %v2418
        %v2452 = vunpack.c.l.b16 %v2419
        %v2453 = vunpack.c.l.b16 %v2420
        %v2454 = vunpack.c.l.b16 %v2421
        %v2455 = vunpack.c.l.b16 %v2422
        %v2456 = vunpack.c.l.b16 %v2423
        %v2457 = vunpack.c.l.b16 %v2424
        %v2458 = vunpack.c.l.b16 %v2425
        %v2459 = vunpack.c.l.b16 %v2426
        %v2460 = vunpack.c.l.b16 %v2427
        %v2461 = vunpack.c.l.b16 %v2428
        %v2462 = vunpack.c.l.b16 %v2429
        %v2463 = vunpack.c.l.b16 %v2430
        %v2464 = vunpack.c.l.b16 %v2431
        %v2465 = vpack.c.b16 %v2450, %v2449
        %v2466 = vpack.c.b16 %v2452, %v2451
        %v2467 = vpack.c.b16 %v2454, %v2453
        %v2468 = vpack.c.b16 %v2456, %v2455
        %v2469 = vpack.c.b16 %v2458, %v2457
        %v2470 = vpack.c.b16 %v2460, %v2459
        %v2471 = vpack.c.b16 %v2462, %v2461
        %v2472 = vpack.c.b16 %v2464, %v2463
        %2481 = vmatpush.bf16.msra.mxu0 %v2472
        %2482 = vmatpush.bf16.msra.mxu0 %v2471
        %2483 = vmatpush.bf16.msra.mxu0 %v2470
        %2484 = vmatpush.bf16.msra.mxu0 %v2469
        %2485 = vmatpush.bf16.msra.mxu0 %v2468
        %2486 = vmatpush.bf16.msra.mxu0 %v2467
        %2487 = vmatpush.bf16.msra.mxu0 %v2466
        %2488 = vmatpush.bf16.msra.mxu0 %v2465
        %2489 = vmatmul.bf16.gmra.mxu0 %v2415
        %v2490 = vpop.f32.mrf.mxu0
        %v2491 = vadd.f32 %v2432, %v2490
        %v2492 = vpop.f32.mrf.mxu0
        %2493 = vdwg.mxu0
        %2494 = vst [vmem:[%s324] sm:$0x1] %v2491
        %s2495 = sand.u32 %s225, 1
        %s2496 = scalar_lea.sflag [#allocation5], %s2495
        %s2497 = sand.u32 %s225, 1
        %s2498 = scalar_lea.vmem [#allocation4], %s2497
        // Predicated region
        $region57: #{gcnn_forward.1} parent=55 // pred_check
          %p2499 = pneg %p235
        $region58: #{gcnn_forward.1} parent=55 // pred_check_branch
          %2501 = sbr.rel (%p2499) target = $region60
        $region59: #{gcnn_forward.1} parent=55 // pred_region
          %2503 = vsyncadd %s2496, 0
          %s2504 = scalar_lea.hbm %s9, %s23
          %s2506 = sshll.u32 %s2498, 4
          %s2507 = int_to_ptr.vmem [resolvable:$true] %s2506
          %s2508 = sshll.u32 %s2504, 4
          %s2509 = int_to_ptr.hbm [resolvable:$true] %s2508
          %2511 = dma.vmem_to_hbm [thread:$0]  %s2507, 16, %s2509, %s2496
        $region60: #{gcnn_forward.1} parent=55 // pred_fallthru
          _
      $region56: #{gcnn_forward.1} parent=5 // pred_fallthru
        _
      %p2512 = scmp.le.s32.totalorder 2, %s18
      // Predicated region
      $region61: #{gcnn_forward.1} parent=5 // pred_check
        %p2513 = pneg %p2512
      $region62: #{gcnn_forward.1} parent=5 // pred_check_branch
        %2515 = sbr.rel (%p2513) target = $region64
      $region63: #{gcnn_forward.1} parent=5 // pred_region
        %s2516 = ssub.s32 %s18, 2
        // Predicated region
        $region65: #{gcnn_forward.1} parent=63 // pred_check
          %p2517 = pneg %p241
        $region66: #{gcnn_forward.1} parent=63 // pred_check_branch
          %2519 = sbr.rel (%p2517) target = $region68
        $region67: #{gcnn_forward.1} parent=63 // pred_region
          %s2520 = sand.u32 %s226, 1
          %s2521 = scalar_lea.sflag [#allocation5], %s2520
          %s2522 = sand.u32 %s226, 1
          %s2523 = scalar_lea.vmem [#allocation4], %s2522
          %2525 = dma.done %s2521, 16
        $region68: #{gcnn_forward.1} parent=63 // pred_fallthru
          _
      $region64: #{gcnn_forward.1} parent=5 // pred_fallthru
        _
    $region6: #{gcnn_forward.1} parent=1 // loop_footer
      %s22 = sadd.s32 1, %s18
    $region7: #{gcnn_forward.1} parent=1 // loop_footer_branch
      %17 = sbr.rel target = $region3
    $region8: #{gcnn_forward.1} parent=1 // loop_exit
      _
    %2526 = vsyncpa [#allocation5], 1
    %s2527 = scalar_lea.sflag [#allocation5], 1
    %2528 = vsyncpa %s2527, 1

</llo_original>
